<compile_context>
chip_gen: v7x
topology: tpu7x:2x2x1
jax: 0.10.0
libtpu: 0.0.40
codegen_flags: <defaults>
</compile_context>

<pallas_src>
import jax
import jax.numpy as jnp
from jax.experimental import pallas as pl
from jax.experimental.pallas import tpu as pltpu


def _edge_tile_index(i, j, start_ref, count_ref):
    """Edge-tile (block) index for node tile i at reduction step j.

    Steps past this node tile's edge range repeat the previous block index
    (so Pallas skips the re-DMA) while the in-kernel pl.when skips the compute.
    """
    cnt = count_ref[i]
    jj = jnp.minimum(j, jnp.maximum(cnt - 1, 0))
    return start_ref[i] + jj


def chemprop_msg_to_node_kernel(start_ref,   # SMEM (n_tiles,) i32: first edge tile per node tile
                                count_ref,   # SMEM (n_tiles,) i32: # edge tiles per node tile
                                dst_ref,     # (1, TE)  i32  edge -> destination node id (sorted)
                                h_ref,       # (TE, FH) f32  edge features (sorted by dst)
                                r_ref,       # (TN, FR) f32  initial node features (tile)
                                wr_ref,      # (FR, FOp) f32 W[:FR]  (Linear.weight^T, no bias)
                                wh_ref,      # (FH, FOp) f32 W[FR:]
                                out_ref,     # (TN, FOp) f32 new node features (tile)
                                msg_ref,     # (TN, FH)  f32 VMEM scatter accumulator
                                zr_ref):     # (TN, FOp) f32 VMEM staging for r @ W_r
    i = pl.program_id(0)          # node tile ("parallel")
    j = pl.program_id(1)          # edge reduction step ("arbitrary", last axis)
    tn = msg_ref.shape[0]
    te = h_ref.shape[0]

    @pl.when(j == 0)
    def _init():
        msg_ref[...] = jnp.zeros_like(msg_ref)
        # Node-feature readout: r tile is already resident at j==0, so this MXU
        # work overlaps the edge-tile DMA instead of stacking into the epilogue.
        zr_ref[...] = jnp.dot(r_ref[...], wr_ref[...],
                              preferred_element_type=jnp.float32)

    @pl.when(j < count_ref[i])
    def _scatter():
        # scatter-add as a one-hot matmul on the MXU (bf16 inputs, f32 accumulate):
        #   onehot[a, e] = (dst[e] - i*tn == a);  msg += onehot @ h
        local_dst = dst_ref[...] - i * tn                               # (1, TE) i32
        row_ids = jax.lax.broadcasted_iota(jnp.int32, (tn, te), 0)      # (TN, TE)
        onehot = (local_dst == row_ids).astype(jnp.bfloat16)            # exact 0/1
        msg_ref[...] += jnp.dot(onehot, h_ref[...].astype(jnp.bfloat16),
                                preferred_element_type=jnp.float32)

    @pl.when(j == pl.num_programs(1) - 1)
    def _finalize():
        # concat([r, msg]) @ W  ==  r @ W_r + msg @ W_h  (bias removed), then ReLU
        z = zr_ref[...] + jnp.dot(msg_ref[...], wh_ref[...],
                                  preferred_element_type=jnp.float32)
        out_ref[...] = jnp.maximum(z, 0.0).astype(out_ref.dtype)


def chemprop_msg_to_node_forward(r, h, nbrs, w_t, *, tn=128, te=512):
    """ChemPropMsgToNode forward.

    r:    (N, FR)  initial node features
    h:    (E, FH)  latest directed edge features
    nbrs: (E, 2)   neighbor list; nbrs[:, 1] is the destination node of edge e
    w_t:  (FR+FH, FO)  output Linear weight transposed, bias removed
          (readout = Linear(no bias) -> ReLU)

    Tile guidance: tn multiple of 128 (128 on v5e, 256 on v6e/v7x), te multiple
    of 256 (512-2048 on v7x, up to 4096 on v6e); bump vmem_limit_bytes along
    with tile growth.
    """
    N, FR = r.shape
    E, FH = h.shape
    FO = w_t.shape[1]

    n_tiles = pl.cdiv(N, tn)
    e_tiles = pl.cdiv(E, te)
    n_pad = n_tiles * tn
    e_pad = e_tiles * te
    fo_pad = pl.cdiv(FO, 128) * 128          # lane-dense output stores

    # --- wrapper-side prep ---------------------------------------------------
    # Sort edges by destination node so each node tile owns a contiguous edge
    # range; padded edges get the sentinel n_pad (matches no node).
    dst = nbrs[:, 1].astype(jnp.int32)
    order = jnp.argsort(dst)
    dst_s = dst[order]
    h_s = h[order]
    dst_p = jnp.concatenate(
        [dst_s, jnp.full((e_pad - E,), n_pad, jnp.int32)]).reshape(1, e_pad)
    h_p = jnp.pad(h_s, ((0, e_pad - E), (0, 0)))
    r_p = jnp.pad(r, ((0, n_pad - N), (0, 0)))
    w_p = jnp.pad(w_t, ((0, 0), (0, fo_pad - FO)))
    wr = w_p[:FR]
    wh = w_p[FR:]

    # Per-node-tile edge-tile ranges (scalar prefetch -> data-dependent DMA).
    bounds = jnp.arange(n_tiles + 1, dtype=jnp.int32) * tn
    edge_bounds = jnp.searchsorted(dst_p[0], bounds, side="left").astype(jnp.int32)
    start_e, end_e = edge_bounds[:-1], edge_bounds[1:]
    start_tile = jnp.clip(start_e // te, 0, e_tiles - 1).astype(jnp.int32)
    last_tile = jnp.clip((end_e - 1) // te, 0, e_tiles - 1).astype(jnp.int32)
    count_tile = jnp.where(end_e > start_e,
                           last_tile - start_tile + 1, 0).astype(jnp.int32)

    grid_spec = pltpu.PrefetchScalarGridSpec(
        num_scalar_prefetch=2,
        grid=(n_tiles, e_tiles),
        in_specs=[
            pl.BlockSpec((1, te),
                         lambda i, j, s, c: (0, _edge_tile_index(i, j, s, c))),
            pl.BlockSpec((te, FH),
                         lambda i, j, s, c: (_edge_tile_index(i, j, s, c), 0)),
            pl.BlockSpec((tn, FR), lambda i, j, s, c: (i, 0)),
            pl.BlockSpec((FR, fo_pad), lambda i, j, s, c: (0, 0)),
            pl.BlockSpec((FH, fo_pad), lambda i, j, s, c: (0, 0)),
        ],
        out_specs=pl.BlockSpec((tn, fo_pad), lambda i, j, s, c: (i, 0)),
        scratch_shapes=[pltpu.VMEM((tn, FH), jnp.float32),
                        pltpu.VMEM((tn, fo_pad), jnp.float32)],
    )

    out = pl.pallas_call(
        chemprop_msg_to_node_kernel,
        out_shape=jax.ShapeDtypeStruct((n_pad, fo_pad), jnp.float32),
        grid_spec=grid_spec,
        compiler_params=pltpu.CompilerParams(
            dimension_semantics=("parallel", "arbitrary"),
            vmem_limit_bytes=64 * 1024 * 1024),
    )(start_tile, count_tile, dst_p, h_p, r_p, wr, wh)

    return out[:N, :FO]


def chemprop_msg_to_node_reference(r, h, nbrs, w_t, *, bf16_edges=False):
    """Pure-JAX reference mirroring the torch module (optionally with the same
    bf16 rounding of h that the kernel's scatter matmul applies)."""
    N = r.shape[0]
    h_acc = h.astype(jnp.bfloat16).astype(jnp.float32) if bf16_edges else h
    msg = jnp.zeros((N, h.shape[1]), jnp.float32).at[nbrs[:, 1]].add(h_acc)
    cat = jnp.concatenate([r, msg], axis=1)
    z = jnp.dot(cat, w_t, precision=jax.lax.Precision.HIGHEST)
    return jnp.maximum(z, 0.0)


if __name__ == "__main__":
    # small synthetic problem
    N = 12          # nodes
    E = 200         # directed edges (padded to one 512-edge tile)
    FR = 32         # initial node feature dim
    FH = 32         # edge (message) feature dim
    FO = 32         # output node feature dim (padded to 128 lanes internally)

    key = jax.random.PRNGKey(0)
    k = jax.random.split(key, 4)

    r = jax.random.normal(k[0], (N, FR), dtype=jnp.float32)
    h = jax.random.normal(k[1], (E, FH), dtype=jnp.float32)
    nbrs = jax.random.randint(k[2], (E, 2), 0, N, dtype=jnp.int32)
    # output Linear (bias removed), stored transposed: (FR+FH, FO)
    w_t = jax.random.normal(k[3], (FR + FH, FO), dtype=jnp.float32) * 0.1

    out = chemprop_msg_to_node_forward(r, h, nbrs, w_t, tn=128, te=512)
    out = jax.block_until_ready(out)
    assert out.shape == (N, FO), out.shape

    # Tight check vs a reference whose scatter also uses bf16-rounded edge
    # features (the kernel's one-hot is exact; accumulation stays f32).
    ref_bf16 = chemprop_msg_to_node_reference(r, h, nbrs, w_t, bf16_edges=True)
    assert jnp.allclose(out, ref_bf16, atol=1e-3, rtol=1e-3), \
        float(jnp.max(jnp.abs(out - ref_bf16)))

    # Sanity check vs the exact f32 module semantics; difference is bounded by
    # the bf16 rounding of h in the scatter matmul (documented trade-off).
    ref_f32 = chemprop_msg_to_node_reference(r, h, nbrs, w_t, bf16_edges=False)
    assert jnp.allclose(out, ref_f32, atol=5e-2, rtol=5e-2), \
        float(jnp.max(jnp.abs(out - ref_f32)))

    print("KERNEL_OK")
</pallas_src>

<mosaic_0001>
module attributes {stable_mosaic.version = 11 : i64} {
  func.func @chemprop_msg_to_node_kernel(%arg0: i32, %arg1: i32, %arg2: memref<1xi32, #tpu.memory_space<smem>>, %arg3: memref<1xi32, #tpu.memory_space<smem>>, %arg4: memref<1x512xi32, #tpu.memory_space<vmem>>, %arg5: memref<512x32xf32, #tpu.memory_space<vmem>>, %arg6: memref<128x32xf32, #tpu.memory_space<vmem>>, %arg7: memref<32x128xf32, #tpu.memory_space<vmem>>, %arg8: memref<32x128xf32, #tpu.memory_space<vmem>>, %arg9: memref<128x128xf32, #tpu.memory_space<vmem>>, %arg10: memref<128x32xf32, #tpu.memory_space<vmem>>, %arg11: memref<128x128xf32, #tpu.memory_space<vmem>>) attributes {dimension_semantics = [#tpu.dimension_semantics<parallel>, #tpu.dimension_semantics<arbitrary>], iteration_bounds = array<i64: 1, 1>, scalar_prefetch = 2 : i64, scratch_operands = 2 : i64, tpu.core_type = #tpu.core_type<tc>, window_params = [{transform_indices = @transform_0, window_bounds = array<i64: 1, 512>}, {transform_indices = @transform_1, window_bounds = array<i64: 512, 32>}, {transform_indices = @transform_2, window_bounds = array<i64: 128, 32>}, {pipeline_mode = #tpu.pipeline_mode<synchronous>, transform_indices = @transform_3, window_bounds = array<i64: 32, 128>}, {pipeline_mode = #tpu.pipeline_mode<synchronous>, transform_indices = @transform_4, window_bounds = array<i64: 32, 128>}, {transform_indices = @transform_5, window_bounds = array<i64: 128, 128>}]} {
    %c0_i32 = arith.constant 0 : i32
    %0 = arith.cmpi eq, %arg1, %c0_i32 : i32
    %1 = arith.extui %0 : i1 to i32
    %c0_i32_0 = arith.constant 0 : i32
    %2 = arith.cmpi ne, %1, %c0_i32_0 : i32
    scf.if %2 {
      %cst = arith.constant 0.000000e+00 : f32
      %11 = vector.broadcast %cst : f32 to vector<128x32xf32>
      %c0 = arith.constant 0 : index
      %c0_4 = arith.constant 0 : index
      %12 = vector.load %arg10[%c0, %c0_4] : memref<128x32xf32, #tpu.memory_space<vmem>>, vector<128x32xf32>
      tpu.vector_store %arg10[%c0, %c0_4], %11 {strides = array<i32>} : memref<128x32xf32, #tpu.memory_space<vmem>>, vector<128x32xf32>,
      %c0_5 = arith.constant 0 : index
      %c0_6 = arith.constant 0 : index
      %13 = vector.load %arg6[%c0_5, %c0_6] : memref<128x32xf32, #tpu.memory_space<vmem>>, vector<128x32xf32>
      %c0_7 = arith.constant 0 : index
      %c0_8 = arith.constant 0 : index
      %14 = vector.load %arg7[%c0_7, %c0_8] : memref<32x128xf32, #tpu.memory_space<vmem>>, vector<32x128xf32>
      %cst_9 = arith.constant dense<0.000000e+00> : vector<128x128xf32>
      %15 = tpu.matmul %13, %14, %cst_9 {dimension_numbers = #tpu.dot_dimension_numbers<[1], [0], [0], [1], [0, 0, 1, 1], [], []>} : vector<128x32xf32>, vector<32x128xf32>, vector<128x128xf32> -> vector<128x128xf32>
      %c0_10 = arith.constant 0 : index
      %c0_11 = arith.constant 0 : index
      %16 = vector.load %arg11[%c0_10, %c0_11] : memref<128x128xf32, #tpu.memory_space<vmem>>, vector<128x128xf32>
      tpu.vector_store %arg11[%c0_10, %c0_11], %15 {strides = array<i32>} : memref<128x128xf32, #tpu.memory_space<vmem>>, vector<128x128xf32>,
    } else {
    }
    %3 = arith.index_cast %arg0 : i32 to index
    %4 = memref.load %arg3[%3] : memref<1xi32, #tpu.memory_space<smem>>
    %5 = arith.cmpi slt, %arg1, %4 : i32
    %6 = arith.extui %5 : i1 to i32
    %c0_i32_1 = arith.constant 0 : i32
    %7 = arith.cmpi ne, %6, %c0_i32_1 : i32
    scf.if %7 {
      %c0 = arith.constant 0 : index
      %c0_4 = arith.constant 0 : index
      %11 = vector.load %arg4[%c0, %c0_4] : memref<1x512xi32, #tpu.memory_space<vmem>>, vector<1x512xi32>
      %c128_i32 = arith.constant 128 : i32
      %12 = arith.muli %arg0, %c128_i32 : i32
      %13 = vector.broadcast %12 : i32 to vector<1x512xi32>
      %14 = arith.subi %11, %13 : vector<1x512xi32>
      %15 = tpu.iota {dimensions = array<i32: 0>} : vector<128x512xi32>
      %16 = vector.broadcast %14 : vector<1x512xi32> to vector<128x512xi32>
      %17 = arith.cmpi eq, %16, %15 : vector<128x512xi32>
      %18 = arith.extui %17 : vector<128x512xi1> to vector<128x512xi32>
      %19 = arith.sitofp %18 : vector<128x512xi32> to vector<128x512xf32>
      %20 = arith.truncf %19 : vector<128x512xf32> to vector<128x512xbf16>
      %c0_5 = arith.constant 0 : index
      %c0_6 = arith.constant 0 : index
      %21 = vector.load %arg10[%c0_5, %c0_6] : memref<128x32xf32, #tpu.memory_space<vmem>>, vector<128x32xf32>
      %c0_7 = arith.constant 0 : index
      %c0_8 = arith.constant 0 : index
      %22 = vector.load %arg5[%c0_7, %c0_8] : memref<512x32xf32, #tpu.memory_space<vmem>>, vector<512x32xf32>
      %23 = arith.truncf %22 : vector<512x32xf32> to vector<512x32xbf16>
      %cst = arith.constant dense<0.000000e+00> : vector<128x32xf32>
      %24 = tpu.matmul %20, %23, %cst {dimension_numbers = #tpu.dot_dimension_numbers<[1], [0], [0], [1], [0, 0, 1, 1], [], []>} : vector<128x512xbf16>, vector<512x32xbf16>, vector<128x32xf32> -> vector<128x32xf32>
      %25 = arith.addf %21, %24 : vector<128x32xf32>
      %c0_9 = arith.constant 0 : index
      %c0_10 = arith.constant 0 : index
      %26 = vector.load %arg10[%c0_9, %c0_10] : memref<128x32xf32, #tpu.memory_space<vmem>>, vector<128x32xf32>
      tpu.vector_store %arg10[%c0_9, %c0_10], %25 {strides = array<i32>} : memref<128x32xf32, #tpu.memory_space<vmem>>, vector<128x32xf32>,
    } else {
    }
    %c0_i32_2 = arith.constant 0 : i32
    %8 = arith.cmpi eq, %arg1, %c0_i32_2 : i32
    %9 = arith.extui %8 : i1 to i32
    %c0_i32_3 = arith.constant 0 : i32
    %10 = arith.cmpi ne, %9, %c0_i32_3 : i32
    scf.if %10 {
      %c0 = arith.constant 0 : index
      %c0_4 = arith.constant 0 : index
      %11 = vector.load %arg11[%c0, %c0_4] : memref<128x128xf32, #tpu.memory_space<vmem>>, vector<128x128xf32>
      %c0_5 = arith.constant 0 : index
      %c0_6 = arith.constant 0 : index
      %12 = vector.load %arg10[%c0_5, %c0_6] : memref<128x32xf32, #tpu.memory_space<vmem>>, vector<128x32xf32>
      %c0_7 = arith.constant 0 : index
      %c0_8 = arith.constant 0 : index
      %13 = vector.load %arg8[%c0_7, %c0_8] : memref<32x128xf32, #tpu.memory_space<vmem>>, vector<32x128xf32>
      %cst = arith.constant dense<0.000000e+00> : vector<128x128xf32>
      %14 = tpu.matmul %12, %13, %cst {dimension_numbers = #tpu.dot_dimension_numbers<[1], [0], [0], [1], [0, 0, 1, 1], [], []>} : vector<128x32xf32>, vector<32x128xf32>, vector<128x128xf32> -> vector<128x128xf32>
      %15 = arith.addf %11, %14 : vector<128x128xf32>
      %cst_9 = arith.constant 0.000000e+00 : f32
      %16 = vector.broadcast %cst_9 : f32 to vector<128x128xf32>
      %17 = arith.maximumf %15, %16 : vector<128x128xf32>
      %c0_10 = arith.constant 0 : index
      %c0_11 = arith.constant 0 : index
      %18 = vector.load %arg9[%c0_10, %c0_11] : memref<128x128xf32, #tpu.memory_space<vmem>>, vector<128x128xf32>
      tpu.vector_store %arg9[%c0_10, %c0_11], %17 {strides = array<i32>} : memref<128x128xf32, #tpu.memory_space<vmem>>, vector<128x128xf32>,
    } else {
    }
    return
  }
  func.func @transform_0(%arg0: i32, %arg1: i32, %arg2: memref<1xi32, #tpu.memory_space<smem>>, %arg3: memref<1xi32, #tpu.memory_space<smem>>) -> (i32, i32) {
    %0 = arith.index_cast %arg0 : i32 to index
    %1 = memref.load %arg3[%0] : memref<1xi32, #tpu.memory_space<smem>>
    %c1_i32 = arith.constant 1 : i32
    %2 = arith.subi %1, %c1_i32 : i32
    %c0_i32 = arith.constant 0 : i32
    %3 = arith.maxsi %2, %c0_i32 : i32
    %4 = arith.minsi %arg1, %3 : i32
    %5 = arith.index_cast %arg0 : i32 to index
    %6 = memref.load %arg2[%5] : memref<1xi32, #tpu.memory_space<smem>>
    %7 = arith.addi %6, %4 : i32
    %c0_i32_0 = arith.constant 0 : i32
    %c0_i32_1 = arith.constant 0 : i32
    return %c0_i32_0, %7 : i32, i32
  }
  func.func @transform_1(%arg0: i32, %arg1: i32, %arg2: memref<1xi32, #tpu.memory_space<smem>>, %arg3: memref<1xi32, #tpu.memory_space<smem>>) -> (i32, i32) {
    %0 = arith.index_cast %arg0 : i32 to index
    %1 = memref.load %arg3[%0] : memref<1xi32, #tpu.memory_space<smem>>
    %c1_i32 = arith.constant 1 : i32
    %2 = arith.subi %1, %c1_i32 : i32
    %c0_i32 = arith.constant 0 : i32
    %3 = arith.maxsi %2, %c0_i32 : i32
    %4 = arith.minsi %arg1, %3 : i32
    %5 = arith.index_cast %arg0 : i32 to index
    %6 = memref.load %arg2[%5] : memref<1xi32, #tpu.memory_space<smem>>
    %7 = arith.addi %6, %4 : i32
    %c0_i32_0 = arith.constant 0 : i32
    %c0_i32_1 = arith.constant 0 : i32
    return %7, %c0_i32_0 : i32, i32
  }
  func.func @transform_2(%arg0: i32, %arg1: i32, %arg2: memref<1xi32, #tpu.memory_space<smem>>, %arg3: memref<1xi32, #tpu.memory_space<smem>>) -> (i32, i32) {
    %c0_i32 = arith.constant 0 : i32
    %c0_i32_0 = arith.constant 0 : i32
    return %arg0, %c0_i32 : i32, i32
  }
  func.func @transform_3(%arg0: i32, %arg1: i32, %arg2: memref<1xi32, #tpu.memory_space<smem>>, %arg3: memref<1xi32, #tpu.memory_space<smem>>) -> (i32, i32) {
    %c0_i32 = arith.constant 0 : i32
    %c0_i32_0 = arith.constant 0 : i32
    %c0_i32_1 = arith.constant 0 : i32
    return %c0_i32, %c0_i32_0 : i32, i32
  }
  func.func @transform_4(%arg0: i32, %arg1: i32, %arg2: memref<1xi32, #tpu.memory_space<smem>>, %arg3: memref<1xi32, #tpu.memory_space<smem>>) -> (i32, i32) {
    %c0_i32 = arith.constant 0 : i32
    %c0_i32_0 = arith.constant 0 : i32
    %c0_i32_1 = arith.constant 0 : i32
    return %c0_i32, %c0_i32_0 : i32, i32
  }
  func.func @transform_5(%arg0: i32, %arg1: i32, %arg2: memref<1xi32, #tpu.memory_space<smem>>, %arg3: memref<1xi32, #tpu.memory_space<smem>>) -> (i32, i32) {
    %c0_i32 = arith.constant 0 : i32
    %c0_i32_0 = arith.constant 0 : i32
    return %arg0, %c0_i32 : i32, i32
  }
}

</mosaic_0001>

<llo_original>
// kernel: tpu_custom_call.1
$region0: #{tpu_custom_call.1}
  #allocation0 [shape = 'u32[]', space=smem, size = 0x4, offset = 0x4, fixed_abs, tag = 'smem constant byte address 0x4 - core index']
  #allocation1 [shape = 'u32[144,128]{1,0:T(1,128)}', space=vmem, size = 0x12000, scoped, tag = 'internal scratch']
  #allocation2 [shape = 'f32[128,32]{1,0:T(8,128)}', space=vmem, size = 0x10000, scoped, tag = 'scratch operand']
  #allocation3 [shape = 'f32[128,128]{1,0:T(8,128)}', space=vmem, size = 0x10000, scoped, tag = 'scratch operand']
  #allocation4 [shape = 's32[1]{0}', space=sflag, size = 0x4, scoped, tag = 'scoped memory for tpu_custom_call.1']
  #allocation5 [shape = 's32[1]{0:T(128)S(6)}', space=smem, size = 0x200, scoped, tag = 'prefetched SMEM operand 0']
  #allocation6 [shape = 's32[1]{0:T(128)S(6)}', space=smem, size = 0x200, scoped, tag = 'prefetched SMEM operand 1']
  %s0 = inlined_call_operand.<no memory space> [shape: s32[1], index: 0, kind: input, shape index: {}]
  %s1 = inlined_call_operand.<no memory space> [shape: s32[1], index: 1, kind: input, shape index: {}]
  %s2 = inlined_call_operand.hbm [shape: s32[1,512], index: 2, kind: input, shape index: {}]
  %s3 = inlined_call_operand.hbm [shape: f32[512,32], index: 3, kind: input, shape index: {}]
  %s4 = inlined_call_operand.hbm [shape: f32[128,32], index: 4, kind: input, shape index: {}]
  %s5 = inlined_call_operand.hbm [shape: f32[32,128], index: 5, kind: input, shape index: {}]
  %s6 = inlined_call_operand.hbm [shape: f32[32,128], index: 6, kind: input, shape index: {}]
  %s7 = inlined_call_operand.hbm [shape: f32[128,128], index: 7, kind: output, shape index: {}]
  %s8 = sld [smem:[#allocation0]]
  $region62: #{tpu_custom_call.1} parent=0
    _
  %s10 = ssub.s32 1, %s8
  %s11 = scalar_select 0, %s10, %s8
  %12 = sst [smem:[#allocation5]] %s0
  %13 = sst [smem:[#allocation6]] %s1
  $region1: #{tpu_custom_call.1} parent=0
    #allocation7 [shape = 'u8[2048]{0}', space=vmem, size = 0x800, scoped, tag = 'input window, operand 2, single buffered']
    #allocation8 [shape = 's32[1]{0}', space=sflag, size = 0x4, scoped, tag = 'scoped memory for tpu_custom_call.1']
    #allocation9 [shape = 's32[1]{0}', space=sflag, size = 0x4, scoped, tag = 'scoped memory for tpu_custom_call.1']
    #allocation10 [shape = 'u8[262144]{0}', space=vmem, size = 0x40000, scoped, tag = 'input window, operand 3, single buffered']
    #allocation11 [shape = 's32[1]{0}', space=sflag, size = 0x4, scoped, tag = 'scoped memory for tpu_custom_call.1']
    #allocation12 [shape = 'u8[65536]{0}', space=vmem, size = 0x10000, scoped, tag = 'input window, operand 4, single buffered']
    #allocation13 [shape = 'u8[16384]{0}', space=vmem, size = 0x4000, scoped, tag = 'input window, operand 5, single buffered']
    #allocation14 [shape = 's32[1]{0}', space=sflag, size = 0x4, scoped, tag = 'scoped memory for tpu_custom_call.1']
    #allocation15 [shape = 'u8[16384]{0}', space=vmem, size = 0x4000, scoped, tag = 'input window, operand 6, single buffered']
    #allocation16 [shape = 'u8[65536]{0}', space=vmem, size = 0x10000, scoped, tag = 'output window, operand 0, single buffered']
    %14 = vsyncpa [#allocation8], 0
    %15 = vsyncpa [#allocation11], 0
    %16 = vsyncpa [#allocation14], 0
    %17 = vsyncpa [#allocation9], 0
    // Predicated region
    $region2: #{tpu_custom_call.1} parent=1 // pred_check
      _
    $region3: #{tpu_custom_call.1} parent=1 // pred_check_branch
      %19 = sbr.rel (0) target = $region5
    $region4: #{tpu_custom_call.1} parent=1 // pred_region
      %s20 = sld [smem:[#allocation6]]
      %s21 = ssub.s32 %s20, 1
      %p22 = scmp.gt.s32.totalorder %s21, 0
      %s23 = scalar_select %p22, %s21, 0
      %p24 = scmp.lt.s32.totalorder 0, %s23
      %s25 = scalar_select %p24, 0, %s23
      %s26 = sld [smem:[#allocation5]]
      %s27 = sadd.s32 %s26, %s25
      %s28 = smul.u32 4, %s27
      %s30 = ssub.s32 64, 64
      %31 = vsyncadd [#allocation8], %s30
      %s32 = smul.addr %s28, 16
      %s33 = scalar_lea.hbm %s2, %s32
      %s35 = sshll.u32 [#allocation7], 4
      %s36 = int_to_ptr.vmem [resolvable:$true] %s35
      %38 = dma.hbm_to_vmem [thread:$0]  %s33, 64, %s36, [#allocation8]
    $region5: #{tpu_custom_call.1} parent=1 // pred_fallthru
      _
    // Predicated region
    $region6: #{tpu_custom_call.1} parent=1 // pred_check
      _
    $region7: #{tpu_custom_call.1} parent=1 // pred_check_branch
      %40 = sbr.rel (0) target = $region9
    $region8: #{tpu_custom_call.1} parent=1 // pred_region
      %s41 = sld [smem:[#allocation6]]
      %s42 = ssub.s32 %s41, 1
      %p43 = scmp.gt.s32.totalorder %s42, 0
      %s44 = scalar_select %p43, %s42, 0
      %p45 = scmp.lt.s32.totalorder 0, %s44
      %s46 = scalar_select %p45, 0, %s44
      %s47 = sld [smem:[#allocation5]]
      %s48 = sadd.s32 %s47, %s46
      %s49 = smul.u32 64, %s48
      %s51 = ssub.s32 8192, 8192
      %52 = vsyncadd [#allocation11], %s51
      %s53 = smul.addr %s49, 128
      %s54 = scalar_lea.hbm %s3, %s53
      %s55 = sshll.u32 [#allocation10], 4
      %s56 = int_to_ptr.vmem [resolvable:$true] %s55
      %61 = dma.hbm_to_vmem [thread:$0]  %s54, 8192, %s56, [#allocation11], 128, 128, 8
    $region9: #{tpu_custom_call.1} parent=1 // pred_fallthru
      _
    // Predicated region
    $region10: #{tpu_custom_call.1} parent=1 // pred_check
      _
    $region11: #{tpu_custom_call.1} parent=1 // pred_check_branch
      %63 = sbr.rel (0) target = $region13
    $region12: #{tpu_custom_call.1} parent=1 // pred_region
      %s65 = ssub.s32 2048, 2048
      %66 = vsyncadd [#allocation11], %s65
      %s67 = sshll.u32 [#allocation12], 4
      %s68 = int_to_ptr.vmem [resolvable:$true] %s67
      %73 = dma.hbm_to_vmem [thread:$0]  %s4, 2048, %s68, [#allocation11], 128, 128, 8
    $region13: #{tpu_custom_call.1} parent=1 // pred_fallthru
      _
    // Predicated region
    $region14: #{tpu_custom_call.1} parent=1 // pred_check
      _
    $region15: #{tpu_custom_call.1} parent=1 // pred_check_branch
      %75 = sbr.rel (0) target = $region17
    $region16: #{tpu_custom_call.1} parent=1 // pred_region
      %s77 = ssub.s32 512, 512
      %78 = vsyncadd [#allocation14], %s77
      %s79 = sshll.u32 [#allocation13], 4
      %s80 = int_to_ptr.vmem [resolvable:$true] %s79
      %85 = dma.hbm_to_vmem [thread:$0]  %s5, 512, %s80, [#allocation14], 128, 128, 8
    $region17: #{tpu_custom_call.1} parent=1 // pred_fallthru
      _
    // Predicated region
    $region18: #{tpu_custom_call.1} parent=1 // pred_check
      _
    $region19: #{tpu_custom_call.1} parent=1 // pred_check_branch
      %87 = sbr.rel (0) target = $region21
    $region20: #{tpu_custom_call.1} parent=1 // pred_region
      %s89 = ssub.s32 512, 512
      %90 = vsyncadd [#allocation14], %s89
      %s91 = sshll.u32 [#allocation15], 4
      %s92 = int_to_ptr.vmem [resolvable:$true] %s91
      %97 = dma.hbm_to_vmem [thread:$0]  %s6, 512, %s92, [#allocation14], 128, 128, 8
    $region21: #{tpu_custom_call.1} parent=1 // pred_fallthru
      _
    // Predicated region
    $region22: #{tpu_custom_call.1} parent=1 // pred_check
      _
    $region23: #{tpu_custom_call.1} parent=1 // pred_check_branch
      %99 = sbr.rel (0) target = $region25
    $region24: #{tpu_custom_call.1} parent=1 // pred_region
      %100 = dma.done [#allocation8], 64
    $region25: #{tpu_custom_call.1} parent=1 // pred_fallthru
      _
    // Predicated region
    $region26: #{tpu_custom_call.1} parent=1 // pred_check
      _
    $region27: #{tpu_custom_call.1} parent=1 // pred_check_branch
      %102 = sbr.rel (0) target = $region29
    $region28: #{tpu_custom_call.1} parent=1 // pred_region
      %103 = dma.done [#allocation11], 8192
    $region29: #{tpu_custom_call.1} parent=1 // pred_fallthru
      _
    // Predicated region
    $region30: #{tpu_custom_call.1} parent=1 // pred_check
      _
    $region31: #{tpu_custom_call.1} parent=1 // pred_check_branch
      %105 = sbr.rel (0) target = $region33
    $region32: #{tpu_custom_call.1} parent=1 // pred_region
      %106 = dma.done [#allocation11], 2048
    $region33: #{tpu_custom_call.1} parent=1 // pred_fallthru
      _
    // Predicated region
    $region34: #{tpu_custom_call.1} parent=1 // pred_check
      _
    $region35: #{tpu_custom_call.1} parent=1 // pred_check_branch
      %108 = sbr.rel (0) target = $region37
    $region36: #{tpu_custom_call.1} parent=1 // pred_region
      %109 = dma.done [#allocation14], 512
    $region37: #{tpu_custom_call.1} parent=1 // pred_fallthru
      _
    // Predicated region
    $region38: #{tpu_custom_call.1} parent=1 // pred_check
      _
    $region39: #{tpu_custom_call.1} parent=1 // pred_check_branch
      %111 = sbr.rel (0) target = $region41
    $region40: #{tpu_custom_call.1} parent=1 // pred_region
      %112 = dma.done [#allocation14], 512
    $region41: #{tpu_custom_call.1} parent=1 // pred_fallthru
      _
    %s113 = sld [smem:[#allocation6]]
    %s114 = ssub.s32 %s113, 1
    %p115 = scmp.gt.s32.totalorder %s114, 0
    %s116 = scalar_select %p115, %s114, 0
    %p117 = scmp.lt.s32.totalorder 0, %s116
    %s118 = scalar_select %p117, 0, %s116
    %s119 = sld [smem:[#allocation5]]
    %s120 = sadd.s32 %s119, %s118
    %s121 = smul.u32 4, %s120
    %s122 = sld [smem:[#allocation6]]
    %s123 = ssub.s32 %s122, 1
    %p124 = scmp.gt.s32.totalorder %s123, 0
    %s125 = scalar_select %p124, %s123, 0
    %p126 = scmp.lt.s32.totalorder 0, %s125
    %s127 = scalar_select %p126, 0, %s125
    %s128 = sld [smem:[#allocation5]]
    %s129 = sadd.s32 %s128, %s127
    %s130 = smul.u32 64, %s129
    %p132 = scmp.eq.s32.totalorder 0, 0
    // Predicated region
    $region42: #{tpu_custom_call.1} parent=1 // pred_check
      %p133 = pneg %p132
    $region43: #{tpu_custom_call.1} parent=1 // pred_check_branch
      %135 = sbr.rel (%p133) target = $region45
    $region44: #{tpu_custom_call.1} parent=1 // pred_region
      %vm136 = vcmask 261120
      %137 = vst.msk [vmem:[#allocation2] sm:$0xff] %vm136, 0.0
      %138 = vst.msk [vmem:[#allocation2 + $0x8] sm:$0xff] %vm136, 0.0
      %139 = vst.msk [vmem:[#allocation2 + $0x10] sm:$0xff] %vm136, 0.0
      %140 = vst.msk [vmem:[#allocation2 + $0x18] sm:$0xff] %vm136, 0.0
      %141 = vst.msk [vmem:[#allocation2 + $0x20] sm:$0xff] %vm136, 0.0
      %142 = vst.msk [vmem:[#allocation2 + $0x28] sm:$0xff] %vm136, 0.0
      %143 = vst.msk [vmem:[#allocation2 + $0x30] sm:$0xff] %vm136, 0.0
      %144 = vst.msk [vmem:[#allocation2 + $0x38] sm:$0xff] %vm136, 0.0
      %145 = vst.msk [vmem:[#allocation2 + $0x40] sm:$0xff] %vm136, 0.0
      %146 = vst.msk [vmem:[#allocation2 + $0x48] sm:$0xff] %vm136, 0.0
      %147 = vst.msk [vmem:[#allocation2 + $0x50] sm:$0xff] %vm136, 0.0
      %148 = vst.msk [vmem:[#allocation2 + $0x58] sm:$0xff] %vm136, 0.0
      %149 = vst.msk [vmem:[#allocation2 + $0x60] sm:$0xff] %vm136, 0.0
      %150 = vst.msk [vmem:[#allocation2 + $0x68] sm:$0xff] %vm136, 0.0
      %151 = vst.msk [vmem:[#allocation2 + $0x70] sm:$0xff] %vm136, 0.0
      %152 = vst.msk [vmem:[#allocation2 + $0x78] sm:$0xff] %vm136, 0.0
      %v153 = vld [vmem:[#allocation12] sm:$0xff]
      %v154 = vld [vmem:[#allocation12 + $0x8] sm:$0xff]
      %v155 = vld [vmem:[#allocation12 + $0x10] sm:$0xff]
      %v156 = vld [vmem:[#allocation12 + $0x18] sm:$0xff]
      %v157 = vld [vmem:[#allocation12 + $0x20] sm:$0xff]
      %v158 = vld [vmem:[#allocation12 + $0x28] sm:$0xff]
      %v159 = vld [vmem:[#allocation12 + $0x30] sm:$0xff]
      %v160 = vld [vmem:[#allocation12 + $0x38] sm:$0xff]
      %v161 = vld [vmem:[#allocation12 + $0x40] sm:$0xff]
      %v162 = vld [vmem:[#allocation12 + $0x48] sm:$0xff]
      %v163 = vld [vmem:[#allocation12 + $0x50] sm:$0xff]
      %v164 = vld [vmem:[#allocation12 + $0x58] sm:$0xff]
      %v165 = vld [vmem:[#allocation12 + $0x60] sm:$0xff]
      %v166 = vld [vmem:[#allocation12 + $0x68] sm:$0xff]
      %v167 = vld [vmem:[#allocation12 + $0x70] sm:$0xff]
      %v168 = vld [vmem:[#allocation12 + $0x78] sm:$0xff]
      %v169 = vld [vmem:[#allocation13] sm:$0xff]
      %v170 = vld [vmem:[#allocation13 + $0x8] sm:$0xff]
      %v171 = vld [vmem:[#allocation13 + $0x10] sm:$0xff]
      %v172 = vld [vmem:[#allocation13 + $0x18] sm:$0xff]
      %v174 = vsel %vm136, %v153, 0
      %v177 = vsel %vm136, %v154, 0
      %v180 = vsel %vm136, %v155, 0
      %v183 = vsel %vm136, %v156, 0
      %v186 = vsel %vm136, %v157, 0
      %v189 = vsel %vm136, %v158, 0
      %v192 = vsel %vm136, %v159, 0
      %v195 = vsel %vm136, %v160, 0
      %v198 = vsel %vm136, %v161, 0
      %v201 = vsel %vm136, %v162, 0
      %v204 = vsel %vm136, %v163, 0
      %v207 = vsel %vm136, %v164, 0
      %v210 = vsel %vm136, %v165, 0
      %v213 = vsel %vm136, %v166, 0
      %v216 = vsel %vm136, %v167, 0
      %v219 = vsel %vm136, %v168, 0
      %221 = vmatprep.subr.mxu0 0.0
      %222 = vmatpush1.msra.mxu0 %v169
      %223 = vmatprep.subr.mxu0 0.0
      %224 = vmatpush1.msra.mxu0 %v170
      %225 = vmatprep.subr.mxu0 0.0
      %226 = vmatpush1.msra.mxu0 %v171
      %227 = vmatprep.subr.mxu0 0.0
      %228 = vmatpush1.msra.mxu0 %v172
      %229 = vmatprep.subr.mxu0 0.0
      %230 = vmatpush1.msra.mxu0 0.0
      %231 = vmatprep.subr.mxu0 0.0
      %232 = vmatpush1.msra.mxu0 0.0
      %233 = vmatprep.subr.mxu0 0.0
      %234 = vmatpush1.msra.mxu0 0.0
      %235 = vmatprep.subr.mxu0 0.0
      %236 = vmatpush1.msra.mxu0 0.0
      %237 = vmatprep.subr.mxu0 0.0
      %238 = vmatpush1.msra.mxu0 0.0
      %239 = vmatprep.subr.mxu0 0.0
      %240 = vmatpush1.msra.mxu0 0.0
      %241 = vmatprep.subr.mxu0 0.0
      %242 = vmatpush1.msra.mxu0 0.0
      %243 = vmatprep.subr.mxu0 0.0
      %244 = vmatpush1.msra.mxu0 0.0
      %245 = vmatprep.subr.mxu0 0.0
      %246 = vmatpush1.msra.mxu0 0.0
      %247 = vmatprep.subr.mxu0 0.0
      %248 = vmatpush1.msra.mxu0 0.0
      %249 = vmatprep.subr.mxu0 0.0
      %250 = vmatpush1.msra.mxu0 0.0
      %251 = vmatprep.subr.mxu0 0.0
      %252 = vmatpush1.msra.mxu0 0.0
      %253 = vmatprep.subr.mxu0 0.0
      %254 = vmatpush1.msra.mxu0 0.0
      %255 = vmatprep.subr.mxu0 0.0
      %256 = vmatpush1.msra.mxu0 0.0
      %257 = vmatprep.subr.mxu0 0.0
      %258 = vmatpush1.msra.mxu0 0.0
      %259 = vmatprep.subr.mxu0 0.0
      %260 = vmatpush1.msra.mxu0 0.0
      %261 = vmatprep.subr.mxu0 0.0
      %262 = vmatpush1.msra.mxu0 0.0
      %263 = vmatprep.subr.mxu0 0.0
      %264 = vmatpush1.msra.mxu0 0.0
      %265 = vmatprep.subr.mxu0 0.0
      %266 = vmatpush1.msra.mxu0 0.0
      %267 = vmatprep.subr.mxu0 0.0
      %268 = vmatpush1.msra.mxu0 0.0
      %269 = vmatprep.subr.mxu0 0.0
      %270 = vmatpush1.msra.mxu0 0.0
      %271 = vmatprep.subr.mxu0 0.0
      %272 = vmatpush1.msra.mxu0 0.0
      %273 = vmatprep.subr.mxu0 0.0
      %274 = vmatpush1.msra.mxu0 0.0
      %275 = vmatprep.subr.mxu0 0.0
      %276 = vmatpush1.msra.mxu0 0.0
      %277 = vmatprep.subr.mxu0 0.0
      %278 = vmatpush1.msra.mxu0 0.0
      %279 = vmatprep.subr.mxu0 0.0
      %280 = vmatpush1.msra.mxu0 0.0
      %281 = vmatprep.subr.mxu0 0.0
      %282 = vmatpush1.msra.mxu0 0.0
      %283 = vmatprep.subr.mxu0 0.0
      %284 = vmatpush1.msra.mxu0 0.0
      %285 = vmatprep.mubr.f32.mxu0 0.0
      %286 = vmatmul.mubr.f32.gmra.mrb[0].mxu0 %v174
      %v287 = vpop.f32.mrb[0].mxu0
      %v288 = vadd.f32 0.0, %v287
      %v289 = vpop.f32.mrb[0].mxu0
      %290 = vmatprep.mubr.f32.mxu0 0.0
      %291 = vmatmul.mubr.f32.gmra.mrb[0].mxu0 %v177
      %v292 = vpop.f32.mrb[0].mxu0
      %v293 = vadd.f32 0.0, %v292
      %v294 = vpop.f32.mrb[0].mxu0
      %295 = vmatprep.mubr.f32.mxu0 0.0
      %296 = vmatmul.mubr.f32.gmra.mrb[0].mxu0 %v180
      %v297 = vpop.f32.mrb[0].mxu0
      %v298 = vadd.f32 0.0, %v297
      %v299 = vpop.f32.mrb[0].mxu0
      %300 = vmatprep.mubr.f32.mxu0 0.0
      %301 = vmatmul.mubr.f32.gmra.mrb[0].mxu0 %v183
      %v302 = vpop.f32.mrb[0].mxu0
      %v303 = vadd.f32 0.0, %v302
      %v304 = vpop.f32.mrb[0].mxu0
      %305 = vmatprep.mubr.f32.mxu0 0.0
      %306 = vmatmul.mubr.f32.gmra.mrb[0].mxu0 %v186
      %v307 = vpop.f32.mrb[0].mxu0
      %v308 = vadd.f32 0.0, %v307
      %v309 = vpop.f32.mrb[0].mxu0
      %310 = vmatprep.mubr.f32.mxu0 0.0
      %311 = vmatmul.mubr.f32.gmra.mrb[0].mxu0 %v189
      %v312 = vpop.f32.mrb[0].mxu0
      %v313 = vadd.f32 0.0, %v312
      %v314 = vpop.f32.mrb[0].mxu0
      %315 = vmatprep.mubr.f32.mxu0 0.0
      %316 = vmatmul.mubr.f32.gmra.mrb[0].mxu0 %v192
      %v317 = vpop.f32.mrb[0].mxu0
      %v318 = vadd.f32 0.0, %v317
      %v319 = vpop.f32.mrb[0].mxu0
      %320 = vmatprep.mubr.f32.mxu0 0.0
      %321 = vmatmul.mubr.f32.gmra.mrb[0].mxu0 %v195
      %v322 = vpop.f32.mrb[0].mxu0
      %v323 = vadd.f32 0.0, %v322
      %v324 = vpop.f32.mrb[0].mxu0
      %325 = vmatprep.mubr.f32.mxu0 0.0
      %326 = vmatmul.mubr.f32.gmra.mrb[0].mxu0 %v198
      %v327 = vpop.f32.mrb[0].mxu0
      %v328 = vadd.f32 0.0, %v327
      %v329 = vpop.f32.mrb[0].mxu0
      %330 = vmatprep.mubr.f32.mxu0 0.0
      %331 = vmatmul.mubr.f32.gmra.mrb[0].mxu0 %v201
      %v332 = vpop.f32.mrb[0].mxu0
      %v333 = vadd.f32 0.0, %v332
      %v334 = vpop.f32.mrb[0].mxu0
      %335 = vmatprep.mubr.f32.mxu0 0.0
      %336 = vmatmul.mubr.f32.gmra.mrb[0].mxu0 %v204
      %v337 = vpop.f32.mrb[0].mxu0
      %v338 = vadd.f32 0.0, %v337
      %v339 = vpop.f32.mrb[0].mxu0
      %340 = vmatprep.mubr.f32.mxu0 0.0
      %341 = vmatmul.mubr.f32.gmra.mrb[0].mxu0 %v207
      %v342 = vpop.f32.mrb[0].mxu0
      %v343 = vadd.f32 0.0, %v342
      %v344 = vpop.f32.mrb[0].mxu0
      %345 = vmatprep.mubr.f32.mxu0 0.0
      %346 = vmatmul.mubr.f32.gmra.mrb[0].mxu0 %v210
      %v347 = vpop.f32.mrb[0].mxu0
      %v348 = vadd.f32 0.0, %v347
      %v349 = vpop.f32.mrb[0].mxu0
      %350 = vmatprep.mubr.f32.mxu0 0.0
      %351 = vmatmul.mubr.f32.gmra.mrb[0].mxu0 %v213
      %v352 = vpop.f32.mrb[0].mxu0
      %v353 = vadd.f32 0.0, %v352
      %v354 = vpop.f32.mrb[0].mxu0
      %355 = vmatprep.mubr.f32.mxu0 0.0
      %356 = vmatmul.mubr.f32.gmra.mrb[0].mxu0 %v216
      %v357 = vpop.f32.mrb[0].mxu0
      %v358 = vadd.f32 0.0, %v357
      %v359 = vpop.f32.mrb[0].mxu0
      %360 = vmatprep.mubr.f32.mxu0 0.0
      %361 = vmatmul.mubr.f32.gmra.mrb[0].mxu0 %v219
      %v362 = vpop.f32.mrb[0].mxu0
      %v363 = vadd.f32 0.0, %v362
      %v364 = vpop.f32.mrb[0].mxu0
      %365 = vdwg.mxu0
      %366 = vst [vmem:[#allocation3] sm:$0xff] %v288
      %367 = vst [vmem:[#allocation3 + $0x8] sm:$0xff] %v293
      %368 = vst [vmem:[#allocation3 + $0x10] sm:$0xff] %v298
      %369 = vst [vmem:[#allocation3 + $0x18] sm:$0xff] %v303
      %370 = vst [vmem:[#allocation3 + $0x20] sm:$0xff] %v308
      %371 = vst [vmem:[#allocation3 + $0x28] sm:$0xff] %v313
      %372 = vst [vmem:[#allocation3 + $0x30] sm:$0xff] %v318
      %373 = vst [vmem:[#allocation3 + $0x38] sm:$0xff] %v323
      %374 = vst [vmem:[#allocation3 + $0x40] sm:$0xff] %v328
      %375 = vst [vmem:[#allocation3 + $0x48] sm:$0xff] %v333
      %376 = vst [vmem:[#allocation3 + $0x50] sm:$0xff] %v338
      %377 = vst [vmem:[#allocation3 + $0x58] sm:$0xff] %v343
      %378 = vst [vmem:[#allocation3 + $0x60] sm:$0xff] %v348
      %379 = vst [vmem:[#allocation3 + $0x68] sm:$0xff] %v353
      %380 = vst [vmem:[#allocation3 + $0x70] sm:$0xff] %v358
      %381 = vst [vmem:[#allocation3 + $0x78] sm:$0xff] %v363
    $region45: #{tpu_custom_call.1} parent=1 // pred_fallthru
      _
    %s382 = sld [smem:[#allocation6]]
    %p383 = scmp.lt.s32.totalorder 0, %s382
    // Predicated region
    $region46: #{tpu_custom_call.1} parent=1 // pred_check
      %p384 = pneg %p383
    $region47: #{tpu_custom_call.1} parent=1 // pred_check_branch
      %386 = sbr.rel (%p384) target = $region49
    $region48: #{tpu_custom_call.1} parent=1 // pred_region
      %v387 = vld [vmem:[#allocation7] sm:$0xf]
      %s388 = smul.u32 0, 128
      %v389 = vstv %s388
      %v390 = vsub.s32 %v387, %v389
      %v391 = vlaneseq
      %v392 = vshrl.u32 %v391, 7
      %v393 = vadd.s32 %v392, 8
      %v394 = vadd.s32 %v392, 16
      %v395 = vadd.s32 %v392, 24
      %v396 = vadd.s32 %v392, 32
      %v397 = vadd.s32 %v392, 40
      %v398 = vadd.s32 %v392, 48
      %v399 = vadd.s32 %v392, 56
      %v400 = vadd.s32 %v392, 64
      %v401 = vadd.s32 %v392, 72
      %v402 = vadd.s32 %v392, 80
      %v403 = vadd.s32 %v392, 88
      %v404 = vadd.s32 %v392, 96
      %v405 = vadd.s32 %v392, 104
      %v406 = vadd.s32 %v392, 112
      %v407 = vadd.s32 %v392, 120
      %v408 = vlaneseq
      %v409 = vshrl.u32 %v408, 7
      %v410 = vsub.s32 0, %v409
      %v411 = vrot.slane %v390, %v410
      %v412 = vlaneseq
      %v413 = vshrl.u32 %v412, 7
      %v414 = vsub.s32 1, %v413
      %v415 = vrot.slane %v390, %v414
      %v416 = vlaneseq
      %v417 = vshrl.u32 %v416, 7
      %v418 = vsub.s32 2, %v417
      %v419 = vrot.slane %v390, %v418
      %v420 = vlaneseq
      %v421 = vshrl.u32 %v420, 7
      %v422 = vsub.s32 3, %v421
      %v423 = vrot.slane %v390, %v422
      %vm424 = vcmp.eq.s32.totalorder %v411, %v392
      %vm425 = vcmp.eq.s32.totalorder %v415, %v392
      %vm426 = vcmp.eq.s32.totalorder %v419, %v392
      %vm427 = vcmp.eq.s32.totalorder %v423, %v392
      %vm428 = vcmp.eq.s32.totalorder %v411, %v393
      %vm429 = vcmp.eq.s32.totalorder %v415, %v393
      %vm430 = vcmp.eq.s32.totalorder %v419, %v393
      %vm431 = vcmp.eq.s32.totalorder %v423, %v393
      %vm432 = vcmp.eq.s32.totalorder %v411, %v394
      %vm433 = vcmp.eq.s32.totalorder %v415, %v394
      %vm434 = vcmp.eq.s32.totalorder %v419, %v394
      %vm435 = vcmp.eq.s32.totalorder %v423, %v394
      %vm436 = vcmp.eq.s32.totalorder %v411, %v395
      %vm437 = vcmp.eq.s32.totalorder %v415, %v395
      %vm438 = vcmp.eq.s32.totalorder %v419, %v395
      %vm439 = vcmp.eq.s32.totalorder %v423, %v395
      %vm440 = vcmp.eq.s32.totalorder %v411, %v396
      %vm441 = vcmp.eq.s32.totalorder %v415, %v396
      %vm442 = vcmp.eq.s32.totalorder %v419, %v396
      %vm443 = vcmp.eq.s32.totalorder %v423, %v396
      %vm444 = vcmp.eq.s32.totalorder %v411, %v397
      %vm445 = vcmp.eq.s32.totalorder %v415, %v397
      %vm446 = vcmp.eq.s32.totalorder %v419, %v397
      %vm447 = vcmp.eq.s32.totalorder %v423, %v397
      %vm448 = vcmp.eq.s32.totalorder %v411, %v398
      %vm449 = vcmp.eq.s32.totalorder %v415, %v398
      %vm450 = vcmp.eq.s32.totalorder %v419, %v398
      %vm451 = vcmp.eq.s32.totalorder %v423, %v398
      %vm452 = vcmp.eq.s32.totalorder %v411, %v399
      %vm453 = vcmp.eq.s32.totalorder %v415, %v399
      %vm454 = vcmp.eq.s32.totalorder %v419, %v399
      %vm455 = vcmp.eq.s32.totalorder %v423, %v399
      %vm456 = vcmp.eq.s32.totalorder %v411, %v400
      %vm457 = vcmp.eq.s32.totalorder %v415, %v400
      %vm458 = vcmp.eq.s32.totalorder %v419, %v400
      %vm459 = vcmp.eq.s32.totalorder %v423, %v400
      %vm460 = vcmp.eq.s32.totalorder %v411, %v401
      %vm461 = vcmp.eq.s32.totalorder %v415, %v401
      %vm462 = vcmp.eq.s32.totalorder %v419, %v401
      %vm463 = vcmp.eq.s32.totalorder %v423, %v401
      %vm464 = vcmp.eq.s32.totalorder %v411, %v402
      %vm465 = vcmp.eq.s32.totalorder %v415, %v402
      %vm466 = vcmp.eq.s32.totalorder %v419, %v402
      %vm467 = vcmp.eq.s32.totalorder %v423, %v402
      %vm468 = vcmp.eq.s32.totalorder %v411, %v403
      %vm469 = vcmp.eq.s32.totalorder %v415, %v403
      %vm470 = vcmp.eq.s32.totalorder %v419, %v403
      %vm471 = vcmp.eq.s32.totalorder %v423, %v403
      %vm472 = vcmp.eq.s32.totalorder %v411, %v404
      %vm473 = vcmp.eq.s32.totalorder %v415, %v404
      %vm474 = vcmp.eq.s32.totalorder %v419, %v404
      %vm475 = vcmp.eq.s32.totalorder %v423, %v404
      %vm476 = vcmp.eq.s32.totalorder %v411, %v405
      %vm477 = vcmp.eq.s32.totalorder %v415, %v405
      %vm478 = vcmp.eq.s32.totalorder %v419, %v405
      %vm479 = vcmp.eq.s32.totalorder %v423, %v405
      %vm480 = vcmp.eq.s32.totalorder %v411, %v406
      %vm481 = vcmp.eq.s32.totalorder %v415, %v406
      %vm482 = vcmp.eq.s32.totalorder %v419, %v406
      %vm483 = vcmp.eq.s32.totalorder %v423, %v406
      %vm484 = vcmp.eq.s32.totalorder %v411, %v407
      %vm485 = vcmp.eq.s32.totalorder %v415, %v407
      %vm486 = vcmp.eq.s32.totalorder %v419, %v407
      %vm487 = vcmp.eq.s32.totalorder %v423, %v407
      %v488 = vsel %vm424, 1, 0
      %v489 = vsel %vm425, 1, 0
      %v490 = vsel %vm426, 1, 0
      %v491 = vsel %vm427, 1, 0
      %v492 = vsel %vm428, 1, 0
      %v493 = vsel %vm429, 1, 0
      %v494 = vsel %vm430, 1, 0
      %v495 = vsel %vm431, 1, 0
      %v496 = vsel %vm432, 1, 0
      %v497 = vsel %vm433, 1, 0
      %v498 = vsel %vm434, 1, 0
      %v499 = vsel %vm435, 1, 0
      %v500 = vsel %vm436, 1, 0
      %v501 = vsel %vm437, 1, 0
      %v502 = vsel %vm438, 1, 0
      %v503 = vsel %vm439, 1, 0
      %v504 = vsel %vm440, 1, 0
      %v505 = vsel %vm441, 1, 0
      %v506 = vsel %vm442, 1, 0
      %v507 = vsel %vm443, 1, 0
      %v508 = vsel %vm444, 1, 0
      %v509 = vsel %vm445, 1, 0
      %v510 = vsel %vm446, 1, 0
      %v511 = vsel %vm447, 1, 0
      %v512 = vsel %vm448, 1, 0
      %v513 = vsel %vm449, 1, 0
      %v514 = vsel %vm450, 1, 0
      %v515 = vsel %vm451, 1, 0
      %v516 = vsel %vm452, 1, 0
      %v517 = vsel %vm453, 1, 0
      %v518 = vsel %vm454, 1, 0
      %v519 = vsel %vm455, 1, 0
      %v520 = vsel %vm456, 1, 0
      %v521 = vsel %vm457, 1, 0
      %v522 = vsel %vm458, 1, 0
      %v523 = vsel %vm459, 1, 0
      %v524 = vsel %vm460, 1, 0
      %v525 = vsel %vm461, 1, 0
      %v526 = vsel %vm462, 1, 0
      %v527 = vsel %vm463, 1, 0
      %v528 = vsel %vm464, 1, 0
      %v529 = vsel %vm465, 1, 0
      %v530 = vsel %vm466, 1, 0
      %v531 = vsel %vm467, 1, 0
      %v532 = vsel %vm468, 1, 0
      %v533 = vsel %vm469, 1, 0
      %v534 = vsel %vm470, 1, 0
      %v535 = vsel %vm471, 1, 0
      %v536 = vsel %vm472, 1, 0
      %v537 = vsel %vm473, 1, 0
      %v538 = vsel %vm474, 1, 0
      %v539 = vsel %vm475, 1, 0
      %v540 = vsel %vm476, 1, 0
      %v541 = vsel %vm477, 1, 0
      %v542 = vsel %vm478, 1, 0
      %v543 = vsel %vm479, 1, 0
      %v544 = vsel %vm480, 1, 0
      %v545 = vsel %vm481, 1, 0
      %v546 = vsel %vm482, 1, 0
      %v547 = vsel %vm483, 1, 0
      %v548 = vsel %vm484, 1, 0
      %v549 = vsel %vm485, 1, 0
      %v550 = vsel %vm486, 1, 0
      %v551 = vsel %vm487, 1, 0
      %v552 = vcvt.s32.f32 %v488
      %v553 = vcvt.s32.f32 %v489
      %v554 = vcvt.s32.f32 %v490
      %v555 = vcvt.s32.f32 %v491
      %v556 = vcvt.s32.f32 %v492
      %v557 = vcvt.s32.f32 %v493
      %v558 = vcvt.s32.f32 %v494
      %v559 = vcvt.s32.f32 %v495
      %v560 = vcvt.s32.f32 %v496
      %v561 = vcvt.s32.f32 %v497
      %v562 = vcvt.s32.f32 %v498
      %v563 = vcvt.s32.f32 %v499
      %v564 = vcvt.s32.f32 %v500
      %v565 = vcvt.s32.f32 %v501
      %v566 = vcvt.s32.f32 %v502
      %v567 = vcvt.s32.f32 %v503
      %v568 = vcvt.s32.f32 %v504
      %v569 = vcvt.s32.f32 %v505
      %v570 = vcvt.s32.f32 %v506
      %v571 = vcvt.s32.f32 %v507
      %v572 = vcvt.s32.f32 %v508
      %v573 = vcvt.s32.f32 %v509
      %v574 = vcvt.s32.f32 %v510
      %v575 = vcvt.s32.f32 %v511
      %v576 = vcvt.s32.f32 %v512
      %v577 = vcvt.s32.f32 %v513
      %v578 = vcvt.s32.f32 %v514
      %v579 = vcvt.s32.f32 %v515
      %v580 = vcvt.s32.f32 %v516
      %v581 = vcvt.s32.f32 %v517
      %v582 = vcvt.s32.f32 %v518
      %v583 = vcvt.s32.f32 %v519
      %v584 = vcvt.s32.f32 %v520
      %v585 = vcvt.s32.f32 %v521
      %v586 = vcvt.s32.f32 %v522
      %v587 = vcvt.s32.f32 %v523
      %v588 = vcvt.s32.f32 %v524
      %v589 = vcvt.s32.f32 %v525
      %v590 = vcvt.s32.f32 %v526
      %v591 = vcvt.s32.f32 %v527
      %v592 = vcvt.s32.f32 %v528
      %v593 = vcvt.s32.f32 %v529
      %v594 = vcvt.s32.f32 %v530
      %v595 = vcvt.s32.f32 %v531
      %v596 = vcvt.s32.f32 %v532
      %v597 = vcvt.s32.f32 %v533
      %v598 = vcvt.s32.f32 %v534
      %v599 = vcvt.s32.f32 %v535
      %v600 = vcvt.s32.f32 %v536
      %v601 = vcvt.s32.f32 %v537
      %v602 = vcvt.s32.f32 %v538
      %v603 = vcvt.s32.f32 %v539
      %v604 = vcvt.s32.f32 %v540
      %v605 = vcvt.s32.f32 %v541
      %v606 = vcvt.s32.f32 %v542
      %v607 = vcvt.s32.f32 %v543
      %v608 = vcvt.s32.f32 %v544
      %v609 = vcvt.s32.f32 %v545
      %v610 = vcvt.s32.f32 %v546
      %v611 = vcvt.s32.f32 %v547
      %v612 = vcvt.s32.f32 %v548
      %v613 = vcvt.s32.f32 %v549
      %v614 = vcvt.s32.f32 %v550
      %v615 = vcvt.s32.f32 %v551
      %v616 = vpack.c.bf16 %v556, %v552
      %v617 = vpack.c.bf16 %v557, %v553
      %v618 = vpack.c.bf16 %v558, %v554
      %v619 = vpack.c.bf16 %v559, %v555
      %v620 = vpack.c.bf16 %v564, %v560
      %v621 = vpack.c.bf16 %v565, %v561
      %v622 = vpack.c.bf16 %v566, %v562
      %v623 = vpack.c.bf16 %v567, %v563
      %v624 = vpack.c.bf16 %v572, %v568
      %v625 = vpack.c.bf16 %v573, %v569
      %v626 = vpack.c.bf16 %v574, %v570
      %v627 = vpack.c.bf16 %v575, %v571
      %v628 = vpack.c.bf16 %v580, %v576
      %v629 = vpack.c.bf16 %v581, %v577
      %v630 = vpack.c.bf16 %v582, %v578
      %v631 = vpack.c.bf16 %v583, %v579
      %v632 = vpack.c.bf16 %v588, %v584
      %v633 = vpack.c.bf16 %v589, %v585
      %v634 = vpack.c.bf16 %v590, %v586
      %v635 = vpack.c.bf16 %v591, %v587
      %v636 = vpack.c.bf16 %v596, %v592
      %v637 = vpack.c.bf16 %v597, %v593
      %v638 = vpack.c.bf16 %v598, %v594
      %v639 = vpack.c.bf16 %v599, %v595
      %v640 = vpack.c.bf16 %v604, %v600
      %v641 = vpack.c.bf16 %v605, %v601
      %v642 = vpack.c.bf16 %v606, %v602
      %v643 = vpack.c.bf16 %v607, %v603
      %v644 = vpack.c.bf16 %v612, %v608
      %v645 = vpack.c.bf16 %v613, %v609
      %v646 = vpack.c.bf16 %v614, %v610
      %v647 = vpack.c.bf16 %v615, %v611
      %v648 = vld [vmem:[#allocation2] sm:$0xff]
      %v649 = vld [vmem:[#allocation2 + $0x8] sm:$0xff]
      %v650 = vld [vmem:[#allocation2 + $0x10] sm:$0xff]
      %v651 = vld [vmem:[#allocation2 + $0x18] sm:$0xff]
      %v652 = vld [vmem:[#allocation2 + $0x20] sm:$0xff]
      %v653 = vld [vmem:[#allocation2 + $0x28] sm:$0xff]
      %v654 = vld [vmem:[#allocation2 + $0x30] sm:$0xff]
      %v655 = vld [vmem:[#allocation2 + $0x38] sm:$0xff]
      %v656 = vld [vmem:[#allocation2 + $0x40] sm:$0xff]
      %v657 = vld [vmem:[#allocation2 + $0x48] sm:$0xff]
      %v658 = vld [vmem:[#allocation2 + $0x50] sm:$0xff]
      %v659 = vld [vmem:[#allocation2 + $0x58] sm:$0xff]
      %v660 = vld [vmem:[#allocation2 + $0x60] sm:$0xff]
      %v661 = vld [vmem:[#allocation2 + $0x68] sm:$0xff]
      %v662 = vld [vmem:[#allocation2 + $0x70] sm:$0xff]
      %v663 = vld [vmem:[#allocation2 + $0x78] sm:$0xff]
      %v664 = vld [vmem:[#allocation10] sm:$0xff]
      %v665 = vld [vmem:[#allocation10 + $0x8] sm:$0xff]
      %v666 = vld [vmem:[#allocation10 + $0x10] sm:$0xff]
      %v667 = vld [vmem:[#allocation10 + $0x18] sm:$0xff]
      %v668 = vld [vmem:[#allocation10 + $0x20] sm:$0xff]
      %v669 = vld [vmem:[#allocation10 + $0x28] sm:$0xff]
      %v670 = vld [vmem:[#allocation10 + $0x30] sm:$0xff]
      %v671 = vld [vmem:[#allocation10 + $0x38] sm:$0xff]
      %v672 = vld [vmem:[#allocation10 + $0x40] sm:$0xff]
      %v673 = vld [vmem:[#allocation10 + $0x48] sm:$0xff]
      %v674 = vld [vmem:[#allocation10 + $0x50] sm:$0xff]
      %v675 = vld [vmem:[#allocation10 + $0x58] sm:$0xff]
      %v676 = vld [vmem:[#allocation10 + $0x60] sm:$0xff]
      %v677 = vld [vmem:[#allocation10 + $0x68] sm:$0xff]
      %v678 = vld [vmem:[#allocation10 + $0x70] sm:$0xff]
      %v679 = vld [vmem:[#allocation10 + $0x78] sm:$0xff]
      %v680 = vld [vmem:[#allocation10 + $0x80] sm:$0xff]
      %v681 = vld [vmem:[#allocation10 + $0x88] sm:$0xff]
      %v682 = vld [vmem:[#allocation10 + $0x90] sm:$0xff]
      %v683 = vld [vmem:[#allocation10 + $0x98] sm:$0xff]
      %v684 = vld [vmem:[#allocation10 + $0xa0] sm:$0xff]
      %v685 = vld [vmem:[#allocation10 + $0xa8] sm:$0xff]
      %v686 = vld [vmem:[#allocation10 + $0xb0] sm:$0xff]
      %v687 = vld [vmem:[#allocation10 + $0xb8] sm:$0xff]
      %v688 = vld [vmem:[#allocation10 + $0xc0] sm:$0xff]
      %v689 = vld [vmem:[#allocation10 + $0xc8] sm:$0xff]
      %v690 = vld [vmem:[#allocation10 + $0xd0] sm:$0xff]
      %v691 = vld [vmem:[#allocation10 + $0xd8] sm:$0xff]
      %v692 = vld [vmem:[#allocation10 + $0xe0] sm:$0xff]
      %v693 = vld [vmem:[#allocation10 + $0xe8] sm:$0xff]
      %v694 = vld [vmem:[#allocation10 + $0xf0] sm:$0xff]
      %v695 = vld [vmem:[#allocation10 + $0xf8] sm:$0xff]
      %v696 = vld [vmem:[#allocation10 + $0x100] sm:$0xff]
      %v697 = vld [vmem:[#allocation10 + $0x108] sm:$0xff]
      %v698 = vld [vmem:[#allocation10 + $0x110] sm:$0xff]
      %v699 = vld [vmem:[#allocation10 + $0x118] sm:$0xff]
      %v700 = vld [vmem:[#allocation10 + $0x120] sm:$0xff]
      %v701 = vld [vmem:[#allocation10 + $0x128] sm:$0xff]
      %v702 = vld [vmem:[#allocation10 + $0x130] sm:$0xff]
      %v703 = vld [vmem:[#allocation10 + $0x138] sm:$0xff]
      %v704 = vld [vmem:[#allocation10 + $0x140] sm:$0xff]
      %v705 = vld [vmem:[#allocation10 + $0x148] sm:$0xff]
      %v706 = vld [vmem:[#allocation10 + $0x150] sm:$0xff]
      %v707 = vld [vmem:[#allocation10 + $0x158] sm:$0xff]
      %v708 = vld [vmem:[#allocation10 + $0x160] sm:$0xff]
      %v709 = vld [vmem:[#allocation10 + $0x168] sm:$0xff]
      %v710 = vld [vmem:[#allocation10 + $0x170] sm:$0xff]
      %v711 = vld [vmem:[#allocation10 + $0x178] sm:$0xff]
      %v712 = vld [vmem:[#allocation10 + $0x180] sm:$0xff]
      %v713 = vld [vmem:[#allocation10 + $0x188] sm:$0xff]
      %v714 = vld [vmem:[#allocation10 + $0x190] sm:$0xff]
      %v715 = vld [vmem:[#allocation10 + $0x198] sm:$0xff]
      %v716 = vld [vmem:[#allocation10 + $0x1a0] sm:$0xff]
      %v717 = vld [vmem:[#allocation10 + $0x1a8] sm:$0xff]
      %v718 = vld [vmem:[#allocation10 + $0x1b0] sm:$0xff]
      %v719 = vld [vmem:[#allocation10 + $0x1b8] sm:$0xff]
      %v720 = vld [vmem:[#allocation10 + $0x1c0] sm:$0xff]
      %v721 = vld [vmem:[#allocation10 + $0x1c8] sm:$0xff]
      %v722 = vld [vmem:[#allocation10 + $0x1d0] sm:$0xff]
      %v723 = vld [vmem:[#allocation10 + $0x1d8] sm:$0xff]
      %v724 = vld [vmem:[#allocation10 + $0x1e0] sm:$0xff]
      %v725 = vld [vmem:[#allocation10 + $0x1e8] sm:$0xff]
      %v726 = vld [vmem:[#allocation10 + $0x1f0] sm:$0xff]
      %v727 = vld [vmem:[#allocation10 + $0x1f8] sm:$0xff]
      %v728 = vpack.c.bf16 %v665, %v664
      %v729 = vpack.c.bf16 %v667, %v666
      %v730 = vpack.c.bf16 %v669, %v668
      %v731 = vpack.c.bf16 %v671, %v670
      %v732 = vpack.c.bf16 %v673, %v672
      %v733 = vpack.c.bf16 %v675, %v674
      %v734 = vpack.c.bf16 %v677, %v676
      %v735 = vpack.c.bf16 %v679, %v678
      %v736 = vpack.c.bf16 %v681, %v680
      %v737 = vpack.c.bf16 %v683, %v682
      %v738 = vpack.c.bf16 %v685, %v684
      %v739 = vpack.c.bf16 %v687, %v686
      %v740 = vpack.c.bf16 %v689, %v688
      %v741 = vpack.c.bf16 %v691, %v690
      %v742 = vpack.c.bf16 %v693, %v692
      %v743 = vpack.c.bf16 %v695, %v694
      %v744 = vpack.c.bf16 %v697, %v696
      %v745 = vpack.c.bf16 %v699, %v698
      %v746 = vpack.c.bf16 %v701, %v700
      %v747 = vpack.c.bf16 %v703, %v702
      %v748 = vpack.c.bf16 %v705, %v704
      %v749 = vpack.c.bf16 %v707, %v706
      %v750 = vpack.c.bf16 %v709, %v708
      %v751 = vpack.c.bf16 %v711, %v710
      %v752 = vpack.c.bf16 %v713, %v712
      %v753 = vpack.c.bf16 %v715, %v714
      %v754 = vpack.c.bf16 %v717, %v716
      %v755 = vpack.c.bf16 %v719, %v718
      %v756 = vpack.c.bf16 %v721, %v720
      %v757 = vpack.c.bf16 %v723, %v722
      %v758 = vpack.c.bf16 %v725, %v724
      %v759 = vpack.c.bf16 %v727, %v726
      %760 = vmatprep.subr.bf16.mxu0 0
      %761 = vmatpush1.bf16.msra.mxu0 %v728
      %762 = vmatprep.subr.bf16.mxu0 0
      %763 = vmatpush1.bf16.msra.mxu0 %v729
      %764 = vmatprep.subr.bf16.mxu0 0
      %765 = vmatpush1.bf16.msra.mxu0 %v730
      %766 = vmatprep.subr.bf16.mxu0 0
      %767 = vmatpush1.bf16.msra.mxu0 %v731
      %768 = vmatprep.subr.bf16.mxu0 0
      %769 = vmatpush1.bf16.msra.mxu0 %v732
      %770 = vmatprep.subr.bf16.mxu0 0
      %771 = vmatpush1.bf16.msra.mxu0 %v733
      %772 = vmatprep.subr.bf16.mxu0 0
      %773 = vmatpush1.bf16.msra.mxu0 %v734
      %774 = vmatprep.subr.bf16.mxu0 0
      %775 = vmatpush1.bf16.msra.mxu0 %v735
      %776 = vmatprep.subr.bf16.mxu0 0
      %777 = vmatpush1.bf16.msra.mxu0 %v736
      %778 = vmatprep.subr.bf16.mxu0 0
      %779 = vmatpush1.bf16.msra.mxu0 %v737
      %780 = vmatprep.subr.bf16.mxu0 0
      %781 = vmatpush1.bf16.msra.mxu0 %v738
      %782 = vmatprep.subr.bf16.mxu0 0
      %783 = vmatpush1.bf16.msra.mxu0 %v739
      %784 = vmatprep.subr.bf16.mxu0 0
      %785 = vmatpush1.bf16.msra.mxu0 %v740
      %786 = vmatprep.subr.bf16.mxu0 0
      %787 = vmatpush1.bf16.msra.mxu0 %v741
      %788 = vmatprep.subr.bf16.mxu0 0
      %789 = vmatpush1.bf16.msra.mxu0 %v742
      %790 = vmatprep.subr.bf16.mxu0 0
      %791 = vmatpush1.bf16.msra.mxu0 %v743
      %792 = vmatprep.mubr.bf16.mxu0 %v617
      %793 = vmatmul.mubr.bf16.gmra.mrb[0].mxu0 %v616
      %v794 = vpop.f32.mrb[0].mxu0
      %v795 = vadd.f32 0.0, %v794
      %v796 = vpop.f32.mrb[0].mxu0
      %v797 = vpop.f32.mrb[0].mxu0
      %v798 = vadd.f32 0.0, %v797
      %v799 = vpop.f32.mrb[0].mxu0
      %800 = vmatprep.mubr.bf16.mxu0 %v621
      %801 = vmatmul.mubr.bf16.gmra.mrb[0].mxu0 %v620
      %v802 = vpop.f32.mrb[0].mxu0
      %v803 = vadd.f32 0.0, %v802
      %v804 = vpop.f32.mrb[0].mxu0
      %v805 = vpop.f32.mrb[0].mxu0
      %v806 = vadd.f32 0.0, %v805
      %v807 = vpop.f32.mrb[0].mxu0
      %808 = vmatprep.mubr.bf16.mxu0 %v625
      %809 = vmatmul.mubr.bf16.gmra.mrb[0].mxu0 %v624
      %v810 = vpop.f32.mrb[0].mxu0
      %v811 = vadd.f32 0.0, %v810
      %v812 = vpop.f32.mrb[0].mxu0
      %v813 = vpop.f32.mrb[0].mxu0
      %v814 = vadd.f32 0.0, %v813
      %v815 = vpop.f32.mrb[0].mxu0
      %816 = vmatprep.mubr.bf16.mxu0 %v629
      %817 = vmatmul.mubr.bf16.gmra.mrb[0].mxu0 %v628
      %v818 = vpop.f32.mrb[0].mxu0
      %v819 = vadd.f32 0.0, %v818
      %v820 = vpop.f32.mrb[0].mxu0
      %v821 = vpop.f32.mrb[0].mxu0
      %v822 = vadd.f32 0.0, %v821
      %v823 = vpop.f32.mrb[0].mxu0
      %824 = vmatprep.mubr.bf16.mxu0 %v633
      %825 = vmatmul.mubr.bf16.gmra.mrb[0].mxu0 %v632
      %v826 = vpop.f32.mrb[0].mxu0
      %v827 = vadd.f32 0.0, %v826
      %v828 = vpop.f32.mrb[0].mxu0
      %v829 = vpop.f32.mrb[0].mxu0
      %v830 = vadd.f32 0.0, %v829
      %v831 = vpop.f32.mrb[0].mxu0
      %832 = vmatprep.mubr.bf16.mxu0 %v637
      %833 = vmatmul.mubr.bf16.gmra.mrb[0].mxu0 %v636
      %v834 = vpop.f32.mrb[0].mxu0
      %v835 = vadd.f32 0.0, %v834
      %v836 = vpop.f32.mrb[0].mxu0
      %v837 = vpop.f32.mrb[0].mxu0
      %v838 = vadd.f32 0.0, %v837
      %v839 = vpop.f32.mrb[0].mxu0
      %840 = vmatprep.mubr.bf16.mxu0 %v641
      %841 = vmatmul.mubr.bf16.gmra.mrb[0].mxu0 %v640
      %v842 = vpop.f32.mrb[0].mxu0
      %v843 = vadd.f32 0.0, %v842
      %v844 = vpop.f32.mrb[0].mxu0
      %v845 = vpop.f32.mrb[0].mxu0
      %v846 = vadd.f32 0.0, %v845
      %v847 = vpop.f32.mrb[0].mxu0
      %848 = vmatprep.mubr.bf16.mxu0 %v645
      %849 = vmatmul.mubr.bf16.gmra.mrb[0].mxu0 %v644
      %v850 = vpop.f32.mrb[0].mxu0
      %v851 = vadd.f32 0.0, %v850
      %v852 = vpop.f32.mrb[0].mxu0
      %v853 = vpop.f32.mrb[0].mxu0
      %v854 = vadd.f32 0.0, %v853
      %v855 = vpop.f32.mrb[0].mxu0
      %856 = vdwg.mxu0
      %857 = vmatprep.subr.bf16.mxu0 0
      %858 = vmatpush1.bf16.msra.mxu0 %v744
      %859 = vmatprep.subr.bf16.mxu0 0
      %860 = vmatpush1.bf16.msra.mxu0 %v745
      %861 = vmatprep.subr.bf16.mxu0 0
      %862 = vmatpush1.bf16.msra.mxu0 %v746
      %863 = vmatprep.subr.bf16.mxu0 0
      %864 = vmatpush1.bf16.msra.mxu0 %v747
      %865 = vmatprep.subr.bf16.mxu0 0
      %866 = vmatpush1.bf16.msra.mxu0 %v748
      %867 = vmatprep.subr.bf16.mxu0 0
      %868 = vmatpush1.bf16.msra.mxu0 %v749
      %869 = vmatprep.subr.bf16.mxu0 0
      %870 = vmatpush1.bf16.msra.mxu0 %v750
      %871 = vmatprep.subr.bf16.mxu0 0
      %872 = vmatpush1.bf16.msra.mxu0 %v751
      %873 = vmatprep.subr.bf16.mxu0 0
      %874 = vmatpush1.bf16.msra.mxu0 %v752
      %875 = vmatprep.subr.bf16.mxu0 0
      %876 = vmatpush1.bf16.msra.mxu0 %v753
      %877 = vmatprep.subr.bf16.mxu0 0
      %878 = vmatpush1.bf16.msra.mxu0 %v754
      %879 = vmatprep.subr.bf16.mxu0 0
      %880 = vmatpush1.bf16.msra.mxu0 %v755
      %881 = vmatprep.subr.bf16.mxu0 0
      %882 = vmatpush1.bf16.msra.mxu0 %v756
      %883 = vmatprep.subr.bf16.mxu0 0
      %884 = vmatpush1.bf16.msra.mxu0 %v757
      %885 = vmatprep.subr.bf16.mxu0 0
      %886 = vmatpush1.bf16.msra.mxu0 %v758
      %887 = vmatprep.subr.bf16.mxu0 0
      %888 = vmatpush1.bf16.msra.mxu0 %v759
      %889 = vmatprep.mubr.bf16.mxu0 %v619
      %890 = vmatmul.mubr.bf16.gmra.mrb[0].mxu0 %v618
      %v891 = vpop.f32.mrb[0].mxu0
      %v892 = vadd.f32 %v795, %v891
      %v893 = vpop.f32.mrb[0].mxu0
      %v894 = vpop.f32.mrb[0].mxu0
      %v895 = vadd.f32 %v798, %v894
      %v896 = vpop.f32.mrb[0].mxu0
      %897 = vmatprep.mubr.bf16.mxu0 %v623
      %898 = vmatmul.mubr.bf16.gmra.mrb[0].mxu0 %v622
      %v899 = vpop.f32.mrb[0].mxu0
      %v900 = vadd.f32 %v803, %v899
      %v901 = vpop.f32.mrb[0].mxu0
      %v902 = vpop.f32.mrb[0].mxu0
      %v903 = vadd.f32 %v806, %v902
      %v904 = vpop.f32.mrb[0].mxu0
      %905 = vmatprep.mubr.bf16.mxu0 %v627
      %906 = vmatmul.mubr.bf16.gmra.mrb[0].mxu0 %v626
      %v907 = vpop.f32.mrb[0].mxu0
      %v908 = vadd.f32 %v811, %v907
      %v909 = vpop.f32.mrb[0].mxu0
      %v910 = vpop.f32.mrb[0].mxu0
      %v911 = vadd.f32 %v814, %v910
      %v912 = vpop.f32.mrb[0].mxu0
      %913 = vmatprep.mubr.bf16.mxu0 %v631
      %914 = vmatmul.mubr.bf16.gmra.mrb[0].mxu0 %v630
      %v915 = vpop.f32.mrb[0].mxu0
      %v916 = vadd.f32 %v819, %v915
      %v917 = vpop.f32.mrb[0].mxu0
      %v918 = vpop.f32.mrb[0].mxu0
      %v919 = vadd.f32 %v822, %v918
      %v920 = vpop.f32.mrb[0].mxu0
      %921 = vmatprep.mubr.bf16.mxu0 %v635
      %922 = vmatmul.mubr.bf16.gmra.mrb[0].mxu0 %v634
      %v923 = vpop.f32.mrb[0].mxu0
      %v924 = vadd.f32 %v827, %v923
      %v925 = vpop.f32.mrb[0].mxu0
      %v926 = vpop.f32.mrb[0].mxu0
      %v927 = vadd.f32 %v830, %v926
      %v928 = vpop.f32.mrb[0].mxu0
      %929 = vmatprep.mubr.bf16.mxu0 %v639
      %930 = vmatmul.mubr.bf16.gmra.mrb[0].mxu0 %v638
      %v931 = vpop.f32.mrb[0].mxu0
      %v932 = vadd.f32 %v835, %v931
      %v933 = vpop.f32.mrb[0].mxu0
      %v934 = vpop.f32.mrb[0].mxu0
      %v935 = vadd.f32 %v838, %v934
      %v936 = vpop.f32.mrb[0].mxu0
      %937 = vmatprep.mubr.bf16.mxu0 %v643
      %938 = vmatmul.mubr.bf16.gmra.mrb[0].mxu0 %v642
      %v939 = vpop.f32.mrb[0].mxu0
      %v940 = vadd.f32 %v843, %v939
      %v941 = vpop.f32.mrb[0].mxu0
      %v942 = vpop.f32.mrb[0].mxu0
      %v943 = vadd.f32 %v846, %v942
      %v944 = vpop.f32.mrb[0].mxu0
      %945 = vmatprep.mubr.bf16.mxu0 %v647
      %946 = vmatmul.mubr.bf16.gmra.mrb[0].mxu0 %v646
      %v947 = vpop.f32.mrb[0].mxu0
      %v948 = vadd.f32 %v851, %v947
      %v949 = vpop.f32.mrb[0].mxu0
      %v950 = vpop.f32.mrb[0].mxu0
      %v951 = vadd.f32 %v854, %v950
      %v952 = vpop.f32.mrb[0].mxu0
      %953 = vdwg.mxu0
      %v954 = vadd.f32 %v648, %v892
      %v955 = vadd.f32 %v649, %v895
      %v956 = vadd.f32 %v650, %v900
      %v957 = vadd.f32 %v651, %v903
      %v958 = vadd.f32 %v652, %v908
      %v959 = vadd.f32 %v653, %v911
      %v960 = vadd.f32 %v654, %v916
      %v961 = vadd.f32 %v655, %v919
      %v962 = vadd.f32 %v656, %v924
      %v963 = vadd.f32 %v657, %v927
      %v964 = vadd.f32 %v658, %v932
      %v965 = vadd.f32 %v659, %v935
      %v966 = vadd.f32 %v660, %v940
      %v967 = vadd.f32 %v661, %v943
      %v968 = vadd.f32 %v662, %v948
      %v969 = vadd.f32 %v663, %v951
      %vm970 = vcmask 261120
      %971 = vst.msk [vmem:[#allocation2] sm:$0xff] %vm970, %v954
      %972 = vst.msk [vmem:[#allocation2 + $0x8] sm:$0xff] %vm970, %v955
      %973 = vst.msk [vmem:[#allocation2 + $0x10] sm:$0xff] %vm970, %v956
      %974 = vst.msk [vmem:[#allocation2 + $0x18] sm:$0xff] %vm970, %v957
      %975 = vst.msk [vmem:[#allocation2 + $0x20] sm:$0xff] %vm970, %v958
      %976 = vst.msk [vmem:[#allocation2 + $0x28] sm:$0xff] %vm970, %v959
      %977 = vst.msk [vmem:[#allocation2 + $0x30] sm:$0xff] %vm970, %v960
      %978 = vst.msk [vmem:[#allocation2 + $0x38] sm:$0xff] %vm970, %v961
      %979 = vst.msk [vmem:[#allocation2 + $0x40] sm:$0xff] %vm970, %v962
      %980 = vst.msk [vmem:[#allocation2 + $0x48] sm:$0xff] %vm970, %v963
      %981 = vst.msk [vmem:[#allocation2 + $0x50] sm:$0xff] %vm970, %v964
      %982 = vst.msk [vmem:[#allocation2 + $0x58] sm:$0xff] %vm970, %v965
      %983 = vst.msk [vmem:[#allocation2 + $0x60] sm:$0xff] %vm970, %v966
      %984 = vst.msk [vmem:[#allocation2 + $0x68] sm:$0xff] %vm970, %v967
      %985 = vst.msk [vmem:[#allocation2 + $0x70] sm:$0xff] %vm970, %v968
      %986 = vst.msk [vmem:[#allocation2 + $0x78] sm:$0xff] %vm970, %v969
    $region49: #{tpu_custom_call.1} parent=1 // pred_fallthru
      _
    // Predicated region
    $region50: #{tpu_custom_call.1} parent=1 // pred_check
      %p987 = pneg %p132
    $region51: #{tpu_custom_call.1} parent=1 // pred_check_branch
      %989 = sbr.rel (%p987) target = $region53
    $region52: #{tpu_custom_call.1} parent=1 // pred_region
      %v990 = vld [vmem:[#allocation3] sm:$0xff]
      %v991 = vld [vmem:[#allocation3 + $0x8] sm:$0xff]
      %v992 = vld [vmem:[#allocation3 + $0x10] sm:$0xff]
      %v993 = vld [vmem:[#allocation3 + $0x18] sm:$0xff]
      %v994 = vld [vmem:[#allocation3 + $0x20] sm:$0xff]
      %v995 = vld [vmem:[#allocation3 + $0x28] sm:$0xff]
      %v996 = vld [vmem:[#allocation3 + $0x30] sm:$0xff]
      %v997 = vld [vmem:[#allocation3 + $0x38] sm:$0xff]
      %v998 = vld [vmem:[#allocation3 + $0x40] sm:$0xff]
      %v999 = vld [vmem:[#allocation3 + $0x48] sm:$0xff]
      %v1000 = vld [vmem:[#allocation3 + $0x50] sm:$0xff]
      %v1001 = vld [vmem:[#allocation3 + $0x58] sm:$0xff]
      %v1002 = vld [vmem:[#allocation3 + $0x60] sm:$0xff]
      %v1003 = vld [vmem:[#allocation3 + $0x68] sm:$0xff]
      %v1004 = vld [vmem:[#allocation3 + $0x70] sm:$0xff]
      %v1005 = vld [vmem:[#allocation3 + $0x78] sm:$0xff]
      %v1006 = vld [vmem:[#allocation2] sm:$0xff]
      %v1007 = vld [vmem:[#allocation2 + $0x8] sm:$0xff]
      %v1008 = vld [vmem:[#allocation2 + $0x10] sm:$0xff]
      %v1009 = vld [vmem:[#allocation2 + $0x18] sm:$0xff]
      %v1010 = vld [vmem:[#allocation2 + $0x20] sm:$0xff]
      %v1011 = vld [vmem:[#allocation2 + $0x28] sm:$0xff]
      %v1012 = vld [vmem:[#allocation2 + $0x30] sm:$0xff]
      %v1013 = vld [vmem:[#allocation2 + $0x38] sm:$0xff]
      %v1014 = vld [vmem:[#allocation2 + $0x40] sm:$0xff]
      %v1015 = vld [vmem:[#allocation2 + $0x48] sm:$0xff]
      %v1016 = vld [vmem:[#allocation2 + $0x50] sm:$0xff]
      %v1017 = vld [vmem:[#allocation2 + $0x58] sm:$0xff]
      %v1018 = vld [vmem:[#allocation2 + $0x60] sm:$0xff]
      %v1019 = vld [vmem:[#allocation2 + $0x68] sm:$0xff]
      %v1020 = vld [vmem:[#allocation2 + $0x70] sm:$0xff]
      %v1021 = vld [vmem:[#allocation2 + $0x78] sm:$0xff]
      %v1022 = vld [vmem:[#allocation15] sm:$0xff]
      %v1023 = vld [vmem:[#allocation15 + $0x8] sm:$0xff]
      %v1024 = vld [vmem:[#allocation15 + $0x10] sm:$0xff]
      %v1025 = vld [vmem:[#allocation15 + $0x18] sm:$0xff]
      %vm1026 = vcmask 261120
      %v1028 = vsel %vm1026, %v1006, 0
      %v1031 = vsel %vm1026, %v1007, 0
      %v1034 = vsel %vm1026, %v1008, 0
      %v1037 = vsel %vm1026, %v1009, 0
      %v1040 = vsel %vm1026, %v1010, 0
      %v1043 = vsel %vm1026, %v1011, 0
      %v1046 = vsel %vm1026, %v1012, 0
      %v1049 = vsel %vm1026, %v1013, 0
      %v1052 = vsel %vm1026, %v1014, 0
      %v1055 = vsel %vm1026, %v1015, 0
      %v1058 = vsel %vm1026, %v1016, 0
      %v1061 = vsel %vm1026, %v1017, 0
      %v1064 = vsel %vm1026, %v1018, 0
      %v1067 = vsel %vm1026, %v1019, 0
      %v1070 = vsel %vm1026, %v1020, 0
      %v1073 = vsel %vm1026, %v1021, 0
      %1075 = vmatprep.subr.mxu0 0.0
      %1076 = vmatpush1.msra.mxu0 %v1022
      %1077 = vmatprep.subr.mxu0 0.0
      %1078 = vmatpush1.msra.mxu0 %v1023
      %1079 = vmatprep.subr.mxu0 0.0
      %1080 = vmatpush1.msra.mxu0 %v1024
      %1081 = vmatprep.subr.mxu0 0.0
      %1082 = vmatpush1.msra.mxu0 %v1025
      %1083 = vmatprep.subr.mxu0 0.0
      %1084 = vmatpush1.msra.mxu0 0.0
      %1085 = vmatprep.subr.mxu0 0.0
      %1086 = vmatpush1.msra.mxu0 0.0
      %1087 = vmatprep.subr.mxu0 0.0
      %1088 = vmatpush1.msra.mxu0 0.0
      %1089 = vmatprep.subr.mxu0 0.0
      %1090 = vmatpush1.msra.mxu0 0.0
      %1091 = vmatprep.subr.mxu0 0.0
      %1092 = vmatpush1.msra.mxu0 0.0
      %1093 = vmatprep.subr.mxu0 0.0
      %1094 = vmatpush1.msra.mxu0 0.0
      %1095 = vmatprep.subr.mxu0 0.0
      %1096 = vmatpush1.msra.mxu0 0.0
      %1097 = vmatprep.subr.mxu0 0.0
      %1098 = vmatpush1.msra.mxu0 0.0
      %1099 = vmatprep.subr.mxu0 0.0
      %1100 = vmatpush1.msra.mxu0 0.0
      %1101 = vmatprep.subr.mxu0 0.0
      %1102 = vmatpush1.msra.mxu0 0.0
      %1103 = vmatprep.subr.mxu0 0.0
      %1104 = vmatpush1.msra.mxu0 0.0
      %1105 = vmatprep.subr.mxu0 0.0
      %1106 = vmatpush1.msra.mxu0 0.0
      %1107 = vmatprep.subr.mxu0 0.0
      %1108 = vmatpush1.msra.mxu0 0.0
      %1109 = vmatprep.subr.mxu0 0.0
      %1110 = vmatpush1.msra.mxu0 0.0
      %1111 = vmatprep.subr.mxu0 0.0
      %1112 = vmatpush1.msra.mxu0 0.0
      %1113 = vmatprep.subr.mxu0 0.0
      %1114 = vmatpush1.msra.mxu0 0.0
      %1115 = vmatprep.subr.mxu0 0.0
      %1116 = vmatpush1.msra.mxu0 0.0
      %1117 = vmatprep.subr.mxu0 0.0
      %1118 = vmatpush1.msra.mxu0 0.0
      %1119 = vmatprep.subr.mxu0 0.0
      %1120 = vmatpush1.msra.mxu0 0.0
      %1121 = vmatprep.subr.mxu0 0.0
      %1122 = vmatpush1.msra.mxu0 0.0
      %1123 = vmatprep.subr.mxu0 0.0
      %1124 = vmatpush1.msra.mxu0 0.0
      %1125 = vmatprep.subr.mxu0 0.0
      %1126 = vmatpush1.msra.mxu0 0.0
      %1127 = vmatprep.subr.mxu0 0.0
      %1128 = vmatpush1.msra.mxu0 0.0
      %1129 = vmatprep.subr.mxu0 0.0
      %1130 = vmatpush1.msra.mxu0 0.0
      %1131 = vmatprep.subr.mxu0 0.0
      %1132 = vmatpush1.msra.mxu0 0.0
      %1133 = vmatprep.subr.mxu0 0.0
      %1134 = vmatpush1.msra.mxu0 0.0
      %1135 = vmatprep.subr.mxu0 0.0
      %1136 = vmatpush1.msra.mxu0 0.0
      %1137 = vmatprep.subr.mxu0 0.0
      %1138 = vmatpush1.msra.mxu0 0.0
      %1139 = vmatprep.mubr.f32.mxu0 0.0
      %1140 = vmatmul.mubr.f32.gmra.mrb[0].mxu0 %v1028
      %v1141 = vpop.f32.mrb[0].mxu0
      %v1142 = vadd.f32 0.0, %v1141
      %v1143 = vpop.f32.mrb[0].mxu0
      %1144 = vmatprep.mubr.f32.mxu0 0.0
      %1145 = vmatmul.mubr.f32.gmra.mrb[0].mxu0 %v1031
      %v1146 = vpop.f32.mrb[0].mxu0
      %v1147 = vadd.f32 0.0, %v1146
      %v1148 = vpop.f32.mrb[0].mxu0
      %1149 = vmatprep.mubr.f32.mxu0 0.0
      %1150 = vmatmul.mubr.f32.gmra.mrb[0].mxu0 %v1034
      %v1151 = vpop.f32.mrb[0].mxu0
      %v1152 = vadd.f32 0.0, %v1151
      %v1153 = vpop.f32.mrb[0].mxu0
      %1154 = vmatprep.mubr.f32.mxu0 0.0
      %1155 = vmatmul.mubr.f32.gmra.mrb[0].mxu0 %v1037
      %v1156 = vpop.f32.mrb[0].mxu0
      %v1157 = vadd.f32 0.0, %v1156
      %v1158 = vpop.f32.mrb[0].mxu0
      %1159 = vmatprep.mubr.f32.mxu0 0.0
      %1160 = vmatmul.mubr.f32.gmra.mrb[0].mxu0 %v1040
      %v1161 = vpop.f32.mrb[0].mxu0
      %v1162 = vadd.f32 0.0, %v1161
      %v1163 = vpop.f32.mrb[0].mxu0
      %1164 = vmatprep.mubr.f32.mxu0 0.0
      %1165 = vmatmul.mubr.f32.gmra.mrb[0].mxu0 %v1043
      %v1166 = vpop.f32.mrb[0].mxu0
      %v1167 = vadd.f32 0.0, %v1166
      %v1168 = vpop.f32.mrb[0].mxu0
      %1169 = vmatprep.mubr.f32.mxu0 0.0
      %1170 = vmatmul.mubr.f32.gmra.mrb[0].mxu0 %v1046
      %v1171 = vpop.f32.mrb[0].mxu0
      %v1172 = vadd.f32 0.0, %v1171
      %v1173 = vpop.f32.mrb[0].mxu0
      %1174 = vmatprep.mubr.f32.mxu0 0.0
      %1175 = vmatmul.mubr.f32.gmra.mrb[0].mxu0 %v1049
      %v1176 = vpop.f32.mrb[0].mxu0
      %v1177 = vadd.f32 0.0, %v1176
      %v1178 = vpop.f32.mrb[0].mxu0
      %1179 = vmatprep.mubr.f32.mxu0 0.0
      %1180 = vmatmul.mubr.f32.gmra.mrb[0].mxu0 %v1052
      %v1181 = vpop.f32.mrb[0].mxu0
      %v1182 = vadd.f32 0.0, %v1181
      %v1183 = vpop.f32.mrb[0].mxu0
      %1184 = vmatprep.mubr.f32.mxu0 0.0
      %1185 = vmatmul.mubr.f32.gmra.mrb[0].mxu0 %v1055
      %v1186 = vpop.f32.mrb[0].mxu0
      %v1187 = vadd.f32 0.0, %v1186
      %v1188 = vpop.f32.mrb[0].mxu0
      %1189 = vmatprep.mubr.f32.mxu0 0.0
      %1190 = vmatmul.mubr.f32.gmra.mrb[0].mxu0 %v1058
      %v1191 = vpop.f32.mrb[0].mxu0
      %v1192 = vadd.f32 0.0, %v1191
      %v1193 = vpop.f32.mrb[0].mxu0
      %1194 = vmatprep.mubr.f32.mxu0 0.0
      %1195 = vmatmul.mubr.f32.gmra.mrb[0].mxu0 %v1061
      %v1196 = vpop.f32.mrb[0].mxu0
      %v1197 = vadd.f32 0.0, %v1196
      %v1198 = vpop.f32.mrb[0].mxu0
      %1199 = vmatprep.mubr.f32.mxu0 0.0
      %1200 = vmatmul.mubr.f32.gmra.mrb[0].mxu0 %v1064
      %v1201 = vpop.f32.mrb[0].mxu0
      %v1202 = vadd.f32 0.0, %v1201
      %v1203 = vpop.f32.mrb[0].mxu0
      %1204 = vmatprep.mubr.f32.mxu0 0.0
      %1205 = vmatmul.mubr.f32.gmra.mrb[0].mxu0 %v1067
      %v1206 = vpop.f32.mrb[0].mxu0
      %v1207 = vadd.f32 0.0, %v1206
      %v1208 = vpop.f32.mrb[0].mxu0
      %1209 = vmatprep.mubr.f32.mxu0 0.0
      %1210 = vmatmul.mubr.f32.gmra.mrb[0].mxu0 %v1070
      %v1211 = vpop.f32.mrb[0].mxu0
      %v1212 = vadd.f32 0.0, %v1211
      %v1213 = vpop.f32.mrb[0].mxu0
      %1214 = vmatprep.mubr.f32.mxu0 0.0
      %1215 = vmatmul.mubr.f32.gmra.mrb[0].mxu0 %v1073
      %v1216 = vpop.f32.mrb[0].mxu0
      %v1217 = vadd.f32 0.0, %v1216
      %v1218 = vpop.f32.mrb[0].mxu0
      %1219 = vdwg.mxu0
      %v1220 = vadd.f32 %v990, %v1142
      %v1221 = vadd.f32 %v991, %v1147
      %v1222 = vadd.f32 %v992, %v1152
      %v1223 = vadd.f32 %v993, %v1157
      %v1224 = vadd.f32 %v994, %v1162
      %v1225 = vadd.f32 %v995, %v1167
      %v1226 = vadd.f32 %v996, %v1172
      %v1227 = vadd.f32 %v997, %v1177
      %v1228 = vadd.f32 %v998, %v1182
      %v1229 = vadd.f32 %v999, %v1187
      %v1230 = vadd.f32 %v1000, %v1192
      %v1231 = vadd.f32 %v1001, %v1197
      %v1232 = vadd.f32 %v1002, %v1202
      %v1233 = vadd.f32 %v1003, %v1207
      %v1234 = vadd.f32 %v1004, %v1212
      %v1235 = vadd.f32 %v1005, %v1217
      %v1236 = vmax.f32 %v1220, 0.0
      %v1237 = vmax.f32 %v1221, 0.0
      %v1238 = vmax.f32 %v1222, 0.0
      %v1239 = vmax.f32 %v1223, 0.0
      %v1240 = vmax.f32 %v1224, 0.0
      %v1241 = vmax.f32 %v1225, 0.0
      %v1242 = vmax.f32 %v1226, 0.0
      %v1243 = vmax.f32 %v1227, 0.0
      %v1244 = vmax.f32 %v1228, 0.0
      %v1245 = vmax.f32 %v1229, 0.0
      %v1246 = vmax.f32 %v1230, 0.0
      %v1247 = vmax.f32 %v1231, 0.0
      %v1248 = vmax.f32 %v1232, 0.0
      %v1249 = vmax.f32 %v1233, 0.0
      %v1250 = vmax.f32 %v1234, 0.0
      %v1251 = vmax.f32 %v1235, 0.0
      %1252 = vst [vmem:[#allocation16] sm:$0xff] %v1236
      %1253 = vst [vmem:[#allocation16 + $0x8] sm:$0xff] %v1237
      %1254 = vst [vmem:[#allocation16 + $0x10] sm:$0xff] %v1238
      %1255 = vst [vmem:[#allocation16 + $0x18] sm:$0xff] %v1239
      %1256 = vst [vmem:[#allocation16 + $0x20] sm:$0xff] %v1240
      %1257 = vst [vmem:[#allocation16 + $0x28] sm:$0xff] %v1241
      %1258 = vst [vmem:[#allocation16 + $0x30] sm:$0xff] %v1242
      %1259 = vst [vmem:[#allocation16 + $0x38] sm:$0xff] %v1243
      %1260 = vst [vmem:[#allocation16 + $0x40] sm:$0xff] %v1244
      %1261 = vst [vmem:[#allocation16 + $0x48] sm:$0xff] %v1245
      %1262 = vst [vmem:[#allocation16 + $0x50] sm:$0xff] %v1246
      %1263 = vst [vmem:[#allocation16 + $0x58] sm:$0xff] %v1247
      %1264 = vst [vmem:[#allocation16 + $0x60] sm:$0xff] %v1248
      %1265 = vst [vmem:[#allocation16 + $0x68] sm:$0xff] %v1249
      %1266 = vst [vmem:[#allocation16 + $0x70] sm:$0xff] %v1250
      %1267 = vst [vmem:[#allocation16 + $0x78] sm:$0xff] %v1251
    $region53: #{tpu_custom_call.1} parent=1 // pred_fallthru
      _
    // Predicated region
    $region54: #{tpu_custom_call.1} parent=1 // pred_check
      _
    $region55: #{tpu_custom_call.1} parent=1 // pred_check_branch
      %1269 = sbr.rel (0) target = $region57
    $region56: #{tpu_custom_call.1} parent=1 // pred_region
      %s1271 = ssub.s32 2048, 2048
      %1272 = vsyncadd [#allocation9], %s1271
      %s1273 = sshll.u32 [#allocation16], 4
      %s1274 = int_to_ptr.vmem [resolvable:$true] %s1273
      %1279 = dma.vmem_to_hbm [thread:$0]  %s1274, 2048, %s7, [#allocation9], 128, 128, 8
    $region57: #{tpu_custom_call.1} parent=1 // pred_fallthru
      _
    // Predicated region
    $region58: #{tpu_custom_call.1} parent=1 // pred_check
      _
    $region59: #{tpu_custom_call.1} parent=1 // pred_check_branch
      %1281 = sbr.rel (0) target = $region61
    $region60: #{tpu_custom_call.1} parent=1 // pred_region
      %1282 = dma.done [#allocation9], 2048
    $region61: #{tpu_custom_call.1} parent=1 // pred_fallthru
      _
    %1283 = vsyncpa [#allocation8], 1
    %1284 = vsyncpa [#allocation11], 1
    %1285 = vsyncpa [#allocation14], 1
    %1286 = vsyncpa [#allocation9], 1

</llo_original>
